<compile_context>
chip_gen: v5e
topology: v5e:2x2
jax: 0.10.0
libtpu: 0.0.40
codegen_flags: <defaults>
</compile_context>

<pallas_src>
import jax
import jax.numpy as jnp
from jax.experimental import pallas as pl
from jax.experimental.pallas import tpu as pltpu

IN_C = 3
MID_C = 2
OUT_C = 2
K = 3
NEG_SLOPE = 0.33


def mynet_kernel(x_ref, w1_ref, b1_ref, w2_ref, o_ref):
    # x_ref : VMEM (B_tile, IN_C, H, W)       raw NCHW images for this batch tile
    # w1_ref: SMEM (MID_C*IN_C*K*K,)          conv1 weights with BN scale folded in
    # b1_ref: SMEM (MID_C,)                   conv1 bias with BN folded in
    # w2_ref: SMEM (OUT_C*MID_C,)             1x1 conv2 weights
    # o_ref : VMEM (B_tile, OUT_C, Ho, Wo)    NCHW output for this batch tile
    b_tile = x_ref.shape[0]
    Ho = o_ref.shape[2]
    Wo = o_ref.shape[3]

    for b in range(b_tile):                       # small static tile -> full unroll
        # Accumulators seeded with the folded (bias + BN) term, one per mid channel.
        acc = [jnp.full((Ho, Wo), b1_ref[cm], dtype=jnp.float32)
               for cm in range(MID_C)]

        # Direct 3x3 valid conv: one row-slab load per (plane, di); the dj shift is
        # an in-register lane slice of that slab; each tap is FMA'd into both
        # accumulators immediately and then discarded (no materialized tap list).
        for ci in range(IN_C):
            for di in range(K):
                rows = x_ref[b, ci, di:di + Ho, :]          # (Ho, W) sublane-offset load
                for dj in range(K):
                    tap = rows[:, dj:dj + Wo]               # (Ho, Wo) lane shift, in-reg
                    k = (ci * K + di) * K + dj
                    for cm in range(MID_C):
                        acc[cm] = acc[cm] + w1_ref[cm * IN_C * K * K + k] * tap

        # LeakyReLU(0.33) on the (conv1 + BN)-folded activations.
        mids = [jnp.where(a >= 0.0, a, NEG_SLOPE * a) for a in acc]

        # Conv2: 1x1, no bias -> 2x2 scalar broadcast-FMAs, written straight to NCHW.
        for co in range(OUT_C):
            out = w2_ref[co * MID_C] * mids[0]
            for cm in range(1, MID_C):
                out = out + w2_ref[co * MID_C + cm] * mids[cm]
            o_ref[b, co, :, :] = out


def _pick_batch_tile(n, max_tile=8):
    """Largest divisor of n not exceeding max_tile (keeps the unroll bounded and
    the per-step VMEM footprint tiny even on v7x's 64 MiB)."""
    for t in range(min(n, max_tile), 0, -1):
        if n % t == 0:
            return t
    return 1


def mynet_forward(x, params, *, batch_tile=None):
    """x: (N, 3, H, W) float32 NCHW. Returns (N, 2, H-2, W-2) float32 NCHW."""
    w1, b1, w2, gamma, beta, run_mean, run_var, eps = params
    N, C, H, W = x.shape
    Ho, Wo = H - K + 1, W - K + 1

    # Fold eval-mode BatchNorm + conv1 bias into conv1 weights/bias (exact algebra).
    # TODO(synk): BN inference semantics only (running stats); training-mode batch
    # statistics are not reproduced.
    scale = gamma / jnp.sqrt(run_var + eps)                         # (MID_C,)
    w1f = (w1 * scale[:, None, None, None]).reshape(-1)             # (MID_C*IN_C*9,)
    b1f = (b1 - run_mean) * scale + beta                            # (MID_C,)
    w2f = w2.reshape(-1)                                            # (OUT_C*MID_C,)

    if batch_tile is None:
        batch_tile = _pick_batch_tile(N)
    assert N % batch_tile == 0, (N, batch_tile)

    smem_spec = pl.BlockSpec(memory_space=pltpu.MemorySpace.SMEM)

    # Explicit VMEM budget (double-buffered in + out blocks + headroom); stays well
    # under v7x's 64 MiB physical VMEM at these tile sizes.
    in_bytes = batch_tile * C * H * W * 4
    out_bytes = batch_tile * OUT_C * Ho * Wo * 4
    vmem_limit = max(2 * (in_bytes + out_bytes) + (4 << 20), 16 << 20)

    out = pl.pallas_call(
        mynet_kernel,
        out_shape=jax.ShapeDtypeStruct((N, OUT_C, Ho, Wo), jnp.float32),
        grid=(N // batch_tile,),
        in_specs=[
            pl.BlockSpec((batch_tile, C, H, W), lambda n: (n, 0, 0, 0)),  # NCHW images
            smem_spec,                                                    # folded conv1 w
            smem_spec,                                                    # folded conv1 b
            smem_spec,                                                    # conv2 w
        ],
        out_specs=pl.BlockSpec((batch_tile, OUT_C, Ho, Wo), lambda n: (n, 0, 0, 0)),
        compiler_params=pltpu.CompilerParams(
            dimension_semantics=("parallel",),
            vmem_limit_bytes=int(vmem_limit),
        ),
    )(x, w1f, b1f, w2f)
    return out


def mynet_reference(x, params):
    """Pure-JAX reference (unfused BN path) for a correctness check."""
    w1, b1, w2, gamma, beta, run_mean, run_var, eps = params
    dn = ("NCHW", "OIHW", "NCHW")
    y = jax.lax.conv_general_dilated(x, w1, (1, 1), "VALID", dimension_numbers=dn)
    y = y + b1[None, :, None, None]
    inv = 1.0 / jnp.sqrt(run_var + eps)
    y = (y - run_mean[None, :, None, None]) * (gamma * inv)[None, :, None, None] \
        + beta[None, :, None, None]
    y = jnp.where(y >= 0.0, y, NEG_SLOPE * y)
    y = jax.lax.conv_general_dilated(y, w2, (1, 1), "VALID", dimension_numbers=dn)
    return y


def init_params(key):
    k1, k2, k3, k4, k5, k6 = jax.random.split(key, 6)
    w1 = jax.random.normal(k1, (MID_C, IN_C, 3, 3), jnp.float32)   # conv.weight
    b1 = jax.random.normal(k2, (MID_C,), jnp.float32)              # conv.bias
    w2 = jax.random.normal(k3, (OUT_C, MID_C, 1, 1), jnp.float32)  # conv2.weight
    gamma = jax.random.normal(k4, (MID_C,), jnp.float32)           # bn.weight
    beta = jax.random.normal(k5, (MID_C,), jnp.float32)            # bn.bias
    run_mean = jax.random.normal(k6, (MID_C,), jnp.float32)        # bn.running_mean
    run_var = jnp.full((MID_C,), 2.3, jnp.float32)                 # bn.running_var
    eps = 1e-5
    return (w1, b1, w2, gamma, beta, run_mean, run_var, eps)


if __name__ == "__main__":
    key = jax.random.PRNGKey(0)
    kx, kp = jax.random.split(key)
    x = jax.random.normal(kx, (2, 3, 16, 16), jnp.float32)   # NCHW, batch=2
    params = init_params(kp)

    out = mynet_forward(x, params)
    jax.block_until_ready(out)
    assert out.shape == (2, 2, 14, 14), out.shape

    ref = mynet_reference(x, params)
    err = float(jnp.max(jnp.abs(out - ref)))
    assert err < 2e-3, f"max abs error {err}"

    print("KERNEL_OK")
</pallas_src>

<mosaic_0001>
module attributes {stable_mosaic.version = 11 : i64} {
  func.func @mynet_kernel(%arg0: i32, %arg1: memref<2x3x16x16xf32, #tpu.memory_space<vmem>>, %arg2: memref<54xf32, #tpu.memory_space<smem>>, %arg3: memref<2xf32, #tpu.memory_space<smem>>, %arg4: memref<4xf32, #tpu.memory_space<smem>>, %arg5: memref<2x2x14x14xf32, #tpu.memory_space<vmem>>) attributes {dimension_semantics = [#tpu.dimension_semantics<parallel>], iteration_bounds = array<i64: 1>, scalar_prefetch = 0 : i64, scratch_operands = 0 : i64, tpu.core_type = #tpu.core_type<tc>, window_params = [{transform_indices = @transform_0, window_bounds = array<i64: 2, 3, 16, 16>}, {transform_indices = @transform_1, window_bounds = array<i64: 54>}, {transform_indices = @transform_2, window_bounds = array<i64: 2>}, {transform_indices = @transform_3, window_bounds = array<i64: 4>}, {transform_indices = @transform_4, window_bounds = array<i64: 2, 2, 14, 14>}]} {
    %c0 = arith.constant 0 : index
    %0 = memref.load %arg3[%c0] : memref<2xf32, #tpu.memory_space<smem>>
    %1 = vector.broadcast %0 : f32 to vector<14x14xf32>
    %c1 = arith.constant 1 : index
    %2 = memref.load %arg3[%c1] : memref<2xf32, #tpu.memory_space<smem>>
    %3 = vector.broadcast %2 : f32 to vector<14x14xf32>
    %c0_0 = arith.constant 0 : index
    %c0_1 = arith.constant 0 : index
    %c0_2 = arith.constant 0 : index
    %c0_3 = arith.constant 0 : index
    %4 = vector.load %arg1[%c0_0, %c0_1, %c0_2, %c0_3] : memref<2x3x16x16xf32, #tpu.memory_space<vmem>>, vector<1x1x14x16xf32>
    %5 = vector.shape_cast %4 : vector<1x1x14x16xf32> to vector<14x16xf32>
    %6 = vector.extract_strided_slice %5 {offsets = [0, 0], sizes = [14, 14], strides = [1, 1]} : vector<14x16xf32> to vector<14x14xf32>
    %c0_4 = arith.constant 0 : index
    %7 = memref.load %arg2[%c0_4] : memref<54xf32, #tpu.memory_space<smem>>
    %8 = vector.broadcast %7 : f32 to vector<14x14xf32>
    %9 = arith.mulf %8, %6 : vector<14x14xf32>
    %10 = arith.addf %1, %9 : vector<14x14xf32>
    %c27 = arith.constant 27 : index
    %11 = memref.load %arg2[%c27] : memref<54xf32, #tpu.memory_space<smem>>
    %12 = vector.broadcast %11 : f32 to vector<14x14xf32>
    %13 = arith.mulf %12, %6 : vector<14x14xf32>
    %14 = arith.addf %3, %13 : vector<14x14xf32>
    %15 = vector.extract_strided_slice %5 {offsets = [0, 1], sizes = [14, 14], strides = [1, 1]} : vector<14x16xf32> to vector<14x14xf32>
    %c1_5 = arith.constant 1 : index
    %16 = memref.load %arg2[%c1_5] : memref<54xf32, #tpu.memory_space<smem>>
    %17 = vector.broadcast %16 : f32 to vector<14x14xf32>
    %18 = arith.mulf %17, %15 : vector<14x14xf32>
    %19 = arith.addf %10, %18 : vector<14x14xf32>
    %c28 = arith.constant 28 : index
    %20 = memref.load %arg2[%c28] : memref<54xf32, #tpu.memory_space<smem>>
    %21 = vector.broadcast %20 : f32 to vector<14x14xf32>
    %22 = arith.mulf %21, %15 : vector<14x14xf32>
    %23 = arith.addf %14, %22 : vector<14x14xf32>
    %24 = vector.extract_strided_slice %5 {offsets = [0, 2], sizes = [14, 14], strides = [1, 1]} : vector<14x16xf32> to vector<14x14xf32>
    %c2 = arith.constant 2 : index
    %25 = memref.load %arg2[%c2] : memref<54xf32, #tpu.memory_space<smem>>
    %26 = vector.broadcast %25 : f32 to vector<14x14xf32>
    %27 = arith.mulf %26, %24 : vector<14x14xf32>
    %28 = arith.addf %19, %27 : vector<14x14xf32>
    %c29 = arith.constant 29 : index
    %29 = memref.load %arg2[%c29] : memref<54xf32, #tpu.memory_space<smem>>
    %30 = vector.broadcast %29 : f32 to vector<14x14xf32>
    %31 = arith.mulf %30, %24 : vector<14x14xf32>
    %32 = arith.addf %23, %31 : vector<14x14xf32>
    %c0_6 = arith.constant 0 : index
    %c0_7 = arith.constant 0 : index
    %c1_8 = arith.constant 1 : index
    %c0_9 = arith.constant 0 : index
    %33 = vector.load %arg1[%c0_6, %c0_7, %c1_8, %c0_9] : memref<2x3x16x16xf32, #tpu.memory_space<vmem>>, vector<1x1x14x16xf32>
    %34 = vector.shape_cast %33 : vector<1x1x14x16xf32> to vector<14x16xf32>
    %35 = vector.extract_strided_slice %34 {offsets = [0, 0], sizes = [14, 14], strides = [1, 1]} : vector<14x16xf32> to vector<14x14xf32>
    %c3 = arith.constant 3 : index
    %36 = memref.load %arg2[%c3] : memref<54xf32, #tpu.memory_space<smem>>
    %37 = vector.broadcast %36 : f32 to vector<14x14xf32>
    %38 = arith.mulf %37, %35 : vector<14x14xf32>
    %39 = arith.addf %28, %38 : vector<14x14xf32>
    %c30 = arith.constant 30 : index
    %40 = memref.load %arg2[%c30] : memref<54xf32, #tpu.memory_space<smem>>
    %41 = vector.broadcast %40 : f32 to vector<14x14xf32>
    %42 = arith.mulf %41, %35 : vector<14x14xf32>
    %43 = arith.addf %32, %42 : vector<14x14xf32>
    %44 = vector.extract_strided_slice %34 {offsets = [0, 1], sizes = [14, 14], strides = [1, 1]} : vector<14x16xf32> to vector<14x14xf32>
    %c4 = arith.constant 4 : index
    %45 = memref.load %arg2[%c4] : memref<54xf32, #tpu.memory_space<smem>>
    %46 = vector.broadcast %45 : f32 to vector<14x14xf32>
    %47 = arith.mulf %46, %44 : vector<14x14xf32>
    %48 = arith.addf %39, %47 : vector<14x14xf32>
    %c31 = arith.constant 31 : index
    %49 = memref.load %arg2[%c31] : memref<54xf32, #tpu.memory_space<smem>>
    %50 = vector.broadcast %49 : f32 to vector<14x14xf32>
    %51 = arith.mulf %50, %44 : vector<14x14xf32>
    %52 = arith.addf %43, %51 : vector<14x14xf32>
    %53 = vector.extract_strided_slice %34 {offsets = [0, 2], sizes = [14, 14], strides = [1, 1]} : vector<14x16xf32> to vector<14x14xf32>
    %c5 = arith.constant 5 : index
    %54 = memref.load %arg2[%c5] : memref<54xf32, #tpu.memory_space<smem>>
    %55 = vector.broadcast %54 : f32 to vector<14x14xf32>
    %56 = arith.mulf %55, %53 : vector<14x14xf32>
    %57 = arith.addf %48, %56 : vector<14x14xf32>
    %c32 = arith.constant 32 : index
    %58 = memref.load %arg2[%c32] : memref<54xf32, #tpu.memory_space<smem>>
    %59 = vector.broadcast %58 : f32 to vector<14x14xf32>
    %60 = arith.mulf %59, %53 : vector<14x14xf32>
    %61 = arith.addf %52, %60 : vector<14x14xf32>
    %c0_10 = arith.constant 0 : index
    %c0_11 = arith.constant 0 : index
    %c2_12 = arith.constant 2 : index
    %c0_13 = arith.constant 0 : index
    %62 = vector.load %arg1[%c0_10, %c0_11, %c2_12, %c0_13] : memref<2x3x16x16xf32, #tpu.memory_space<vmem>>, vector<1x1x14x16xf32>
    %63 = vector.shape_cast %62 : vector<1x1x14x16xf32> to vector<14x16xf32>
    %64 = vector.extract_strided_slice %63 {offsets = [0, 0], sizes = [14, 14], strides = [1, 1]} : vector<14x16xf32> to vector<14x14xf32>
    %c6 = arith.constant 6 : index
    %65 = memref.load %arg2[%c6] : memref<54xf32, #tpu.memory_space<smem>>
    %66 = vector.broadcast %65 : f32 to vector<14x14xf32>
    %67 = arith.mulf %66, %64 : vector<14x14xf32>
    %68 = arith.addf %57, %67 : vector<14x14xf32>
    %c33 = arith.constant 33 : index
    %69 = memref.load %arg2[%c33] : memref<54xf32, #tpu.memory_space<smem>>
    %70 = vector.broadcast %69 : f32 to vector<14x14xf32>
    %71 = arith.mulf %70, %64 : vector<14x14xf32>
    %72 = arith.addf %61, %71 : vector<14x14xf32>
    %73 = vector.extract_strided_slice %63 {offsets = [0, 1], sizes = [14, 14], strides = [1, 1]} : vector<14x16xf32> to vector<14x14xf32>
    %c7 = arith.constant 7 : index
    %74 = memref.load %arg2[%c7] : memref<54xf32, #tpu.memory_space<smem>>
    %75 = vector.broadcast %74 : f32 to vector<14x14xf32>
    %76 = arith.mulf %75, %73 : vector<14x14xf32>
    %77 = arith.addf %68, %76 : vector<14x14xf32>
    %c34 = arith.constant 34 : index
    %78 = memref.load %arg2[%c34] : memref<54xf32, #tpu.memory_space<smem>>
    %79 = vector.broadcast %78 : f32 to vector<14x14xf32>
    %80 = arith.mulf %79, %73 : vector<14x14xf32>
    %81 = arith.addf %72, %80 : vector<14x14xf32>
    %82 = vector.extract_strided_slice %63 {offsets = [0, 2], sizes = [14, 14], strides = [1, 1]} : vector<14x16xf32> to vector<14x14xf32>
    %c8 = arith.constant 8 : index
    %83 = memref.load %arg2[%c8] : memref<54xf32, #tpu.memory_space<smem>>
    %84 = vector.broadcast %83 : f32 to vector<14x14xf32>
    %85 = arith.mulf %84, %82 : vector<14x14xf32>
    %86 = arith.addf %77, %85 : vector<14x14xf32>
    %c35 = arith.constant 35 : index
    %87 = memref.load %arg2[%c35] : memref<54xf32, #tpu.memory_space<smem>>
    %88 = vector.broadcast %87 : f32 to vector<14x14xf32>
    %89 = arith.mulf %88, %82 : vector<14x14xf32>
    %90 = arith.addf %81, %89 : vector<14x14xf32>
    %c0_14 = arith.constant 0 : index
    %c1_15 = arith.constant 1 : index
    %c0_16 = arith.constant 0 : index
    %c0_17 = arith.constant 0 : index
    %91 = vector.load %arg1[%c0_14, %c1_15, %c0_16, %c0_17] : memref<2x3x16x16xf32, #tpu.memory_space<vmem>>, vector<1x1x14x16xf32>
    %92 = vector.shape_cast %91 : vector<1x1x14x16xf32> to vector<14x16xf32>
    %93 = vector.extract_strided_slice %92 {offsets = [0, 0], sizes = [14, 14], strides = [1, 1]} : vector<14x16xf32> to vector<14x14xf32>
    %c9 = arith.constant 9 : index
    %94 = memref.load %arg2[%c9] : memref<54xf32, #tpu.memory_space<smem>>
    %95 = vector.broadcast %94 : f32 to vector<14x14xf32>
    %96 = arith.mulf %95, %93 : vector<14x14xf32>
    %97 = arith.addf %86, %96 : vector<14x14xf32>
    %c36 = arith.constant 36 : index
    %98 = memref.load %arg2[%c36] : memref<54xf32, #tpu.memory_space<smem>>
    %99 = vector.broadcast %98 : f32 to vector<14x14xf32>
    %100 = arith.mulf %99, %93 : vector<14x14xf32>
    %101 = arith.addf %90, %100 : vector<14x14xf32>
    %102 = vector.extract_strided_slice %92 {offsets = [0, 1], sizes = [14, 14], strides = [1, 1]} : vector<14x16xf32> to vector<14x14xf32>
    %c10 = arith.constant 10 : index
    %103 = memref.load %arg2[%c10] : memref<54xf32, #tpu.memory_space<smem>>
    %104 = vector.broadcast %103 : f32 to vector<14x14xf32>
    %105 = arith.mulf %104, %102 : vector<14x14xf32>
    %106 = arith.addf %97, %105 : vector<14x14xf32>
    %c37 = arith.constant 37 : index
    %107 = memref.load %arg2[%c37] : memref<54xf32, #tpu.memory_space<smem>>
    %108 = vector.broadcast %107 : f32 to vector<14x14xf32>
    %109 = arith.mulf %108, %102 : vector<14x14xf32>
    %110 = arith.addf %101, %109 : vector<14x14xf32>
    %111 = vector.extract_strided_slice %92 {offsets = [0, 2], sizes = [14, 14], strides = [1, 1]} : vector<14x16xf32> to vector<14x14xf32>
    %c11 = arith.constant 11 : index
    %112 = memref.load %arg2[%c11] : memref<54xf32, #tpu.memory_space<smem>>
    %113 = vector.broadcast %112 : f32 to vector<14x14xf32>
    %114 = arith.mulf %113, %111 : vector<14x14xf32>
    %115 = arith.addf %106, %114 : vector<14x14xf32>
    %c38 = arith.constant 38 : index
    %116 = memref.load %arg2[%c38] : memref<54xf32, #tpu.memory_space<smem>>
    %117 = vector.broadcast %116 : f32 to vector<14x14xf32>
    %118 = arith.mulf %117, %111 : vector<14x14xf32>
    %119 = arith.addf %110, %118 : vector<14x14xf32>
    %c0_18 = arith.constant 0 : index
    %c1_19 = arith.constant 1 : index
    %c1_20 = arith.constant 1 : index
    %c0_21 = arith.constant 0 : index
    %120 = vector.load %arg1[%c0_18, %c1_19, %c1_20, %c0_21] : memref<2x3x16x16xf32, #tpu.memory_space<vmem>>, vector<1x1x14x16xf32>
    %121 = vector.shape_cast %120 : vector<1x1x14x16xf32> to vector<14x16xf32>
    %122 = vector.extract_strided_slice %121 {offsets = [0, 0], sizes = [14, 14], strides = [1, 1]} : vector<14x16xf32> to vector<14x14xf32>
    %c12 = arith.constant 12 : index
    %123 = memref.load %arg2[%c12] : memref<54xf32, #tpu.memory_space<smem>>
    %124 = vector.broadcast %123 : f32 to vector<14x14xf32>
    %125 = arith.mulf %124, %122 : vector<14x14xf32>
    %126 = arith.addf %115, %125 : vector<14x14xf32>
    %c39 = arith.constant 39 : index
    %127 = memref.load %arg2[%c39] : memref<54xf32, #tpu.memory_space<smem>>
    %128 = vector.broadcast %127 : f32 to vector<14x14xf32>
    %129 = arith.mulf %128, %122 : vector<14x14xf32>
    %130 = arith.addf %119, %129 : vector<14x14xf32>
    %131 = vector.extract_strided_slice %121 {offsets = [0, 1], sizes = [14, 14], strides = [1, 1]} : vector<14x16xf32> to vector<14x14xf32>
    %c13 = arith.constant 13 : index
    %132 = memref.load %arg2[%c13] : memref<54xf32, #tpu.memory_space<smem>>
    %133 = vector.broadcast %132 : f32 to vector<14x14xf32>
    %134 = arith.mulf %133, %131 : vector<14x14xf32>
    %135 = arith.addf %126, %134 : vector<14x14xf32>
    %c40 = arith.constant 40 : index
    %136 = memref.load %arg2[%c40] : memref<54xf32, #tpu.memory_space<smem>>
    %137 = vector.broadcast %136 : f32 to vector<14x14xf32>
    %138 = arith.mulf %137, %131 : vector<14x14xf32>
    %139 = arith.addf %130, %138 : vector<14x14xf32>
    %140 = vector.extract_strided_slice %121 {offsets = [0, 2], sizes = [14, 14], strides = [1, 1]} : vector<14x16xf32> to vector<14x14xf32>
    %c14 = arith.constant 14 : index
    %141 = memref.load %arg2[%c14] : memref<54xf32, #tpu.memory_space<smem>>
    %142 = vector.broadcast %141 : f32 to vector<14x14xf32>
    %143 = arith.mulf %142, %140 : vector<14x14xf32>
    %144 = arith.addf %135, %143 : vector<14x14xf32>
    %c41 = arith.constant 41 : index
    %145 = memref.load %arg2[%c41] : memref<54xf32, #tpu.memory_space<smem>>
    %146 = vector.broadcast %145 : f32 to vector<14x14xf32>
    %147 = arith.mulf %146, %140 : vector<14x14xf32>
    %148 = arith.addf %139, %147 : vector<14x14xf32>
    %c0_22 = arith.constant 0 : index
    %c1_23 = arith.constant 1 : index
    %c2_24 = arith.constant 2 : index
    %c0_25 = arith.constant 0 : index
    %149 = vector.load %arg1[%c0_22, %c1_23, %c2_24, %c0_25] : memref<2x3x16x16xf32, #tpu.memory_space<vmem>>, vector<1x1x14x16xf32>
    %150 = vector.shape_cast %149 : vector<1x1x14x16xf32> to vector<14x16xf32>
    %151 = vector.extract_strided_slice %150 {offsets = [0, 0], sizes = [14, 14], strides = [1, 1]} : vector<14x16xf32> to vector<14x14xf32>
    %c15 = arith.constant 15 : index
    %152 = memref.load %arg2[%c15] : memref<54xf32, #tpu.memory_space<smem>>
    %153 = vector.broadcast %152 : f32 to vector<14x14xf32>
    %154 = arith.mulf %153, %151 : vector<14x14xf32>
    %155 = arith.addf %144, %154 : vector<14x14xf32>
    %c42 = arith.constant 42 : index
    %156 = memref.load %arg2[%c42] : memref<54xf32, #tpu.memory_space<smem>>
    %157 = vector.broadcast %156 : f32 to vector<14x14xf32>
    %158 = arith.mulf %157, %151 : vector<14x14xf32>
    %159 = arith.addf %148, %158 : vector<14x14xf32>
    %160 = vector.extract_strided_slice %150 {offsets = [0, 1], sizes = [14, 14], strides = [1, 1]} : vector<14x16xf32> to vector<14x14xf32>
    %c16 = arith.constant 16 : index
    %161 = memref.load %arg2[%c16] : memref<54xf32, #tpu.memory_space<smem>>
    %162 = vector.broadcast %161 : f32 to vector<14x14xf32>
    %163 = arith.mulf %162, %160 : vector<14x14xf32>
    %164 = arith.addf %155, %163 : vector<14x14xf32>
    %c43 = arith.constant 43 : index
    %165 = memref.load %arg2[%c43] : memref<54xf32, #tpu.memory_space<smem>>
    %166 = vector.broadcast %165 : f32 to vector<14x14xf32>
    %167 = arith.mulf %166, %160 : vector<14x14xf32>
    %168 = arith.addf %159, %167 : vector<14x14xf32>
    %169 = vector.extract_strided_slice %150 {offsets = [0, 2], sizes = [14, 14], strides = [1, 1]} : vector<14x16xf32> to vector<14x14xf32>
    %c17 = arith.constant 17 : index
    %170 = memref.load %arg2[%c17] : memref<54xf32, #tpu.memory_space<smem>>
    %171 = vector.broadcast %170 : f32 to vector<14x14xf32>
    %172 = arith.mulf %171, %169 : vector<14x14xf32>
    %173 = arith.addf %164, %172 : vector<14x14xf32>
    %c44 = arith.constant 44 : index
    %174 = memref.load %arg2[%c44] : memref<54xf32, #tpu.memory_space<smem>>
    %175 = vector.broadcast %174 : f32 to vector<14x14xf32>
    %176 = arith.mulf %175, %169 : vector<14x14xf32>
    %177 = arith.addf %168, %176 : vector<14x14xf32>
    %c0_26 = arith.constant 0 : index
    %c2_27 = arith.constant 2 : index
    %c0_28 = arith.constant 0 : index
    %c0_29 = arith.constant 0 : index
    %178 = vector.load %arg1[%c0_26, %c2_27, %c0_28, %c0_29] : memref<2x3x16x16xf32, #tpu.memory_space<vmem>>, vector<1x1x14x16xf32>
    %179 = vector.shape_cast %178 : vector<1x1x14x16xf32> to vector<14x16xf32>
    %180 = vector.extract_strided_slice %179 {offsets = [0, 0], sizes = [14, 14], strides = [1, 1]} : vector<14x16xf32> to vector<14x14xf32>
    %c18 = arith.constant 18 : index
    %181 = memref.load %arg2[%c18] : memref<54xf32, #tpu.memory_space<smem>>
    %182 = vector.broadcast %181 : f32 to vector<14x14xf32>
    %183 = arith.mulf %182, %180 : vector<14x14xf32>
    %184 = arith.addf %173, %183 : vector<14x14xf32>
    %c45 = arith.constant 45 : index
    %185 = memref.load %arg2[%c45] : memref<54xf32, #tpu.memory_space<smem>>
    %186 = vector.broadcast %185 : f32 to vector<14x14xf32>
    %187 = arith.mulf %186, %180 : vector<14x14xf32>
    %188 = arith.addf %177, %187 : vector<14x14xf32>
    %189 = vector.extract_strided_slice %179 {offsets = [0, 1], sizes = [14, 14], strides = [1, 1]} : vector<14x16xf32> to vector<14x14xf32>
    %c19 = arith.constant 19 : index
    %190 = memref.load %arg2[%c19] : memref<54xf32, #tpu.memory_space<smem>>
    %191 = vector.broadcast %190 : f32 to vector<14x14xf32>
    %192 = arith.mulf %191, %189 : vector<14x14xf32>
    %193 = arith.addf %184, %192 : vector<14x14xf32>
    %c46 = arith.constant 46 : index
    %194 = memref.load %arg2[%c46] : memref<54xf32, #tpu.memory_space<smem>>
    %195 = vector.broadcast %194 : f32 to vector<14x14xf32>
    %196 = arith.mulf %195, %189 : vector<14x14xf32>
    %197 = arith.addf %188, %196 : vector<14x14xf32>
    %198 = vector.extract_strided_slice %179 {offsets = [0, 2], sizes = [14, 14], strides = [1, 1]} : vector<14x16xf32> to vector<14x14xf32>
    %c20 = arith.constant 20 : index
    %199 = memref.load %arg2[%c20] : memref<54xf32, #tpu.memory_space<smem>>
    %200 = vector.broadcast %199 : f32 to vector<14x14xf32>
    %201 = arith.mulf %200, %198 : vector<14x14xf32>
    %202 = arith.addf %193, %201 : vector<14x14xf32>
    %c47 = arith.constant 47 : index
    %203 = memref.load %arg2[%c47] : memref<54xf32, #tpu.memory_space<smem>>
    %204 = vector.broadcast %203 : f32 to vector<14x14xf32>
    %205 = arith.mulf %204, %198 : vector<14x14xf32>
    %206 = arith.addf %197, %205 : vector<14x14xf32>
    %c0_30 = arith.constant 0 : index
    %c2_31 = arith.constant 2 : index
    %c1_32 = arith.constant 1 : index
    %c0_33 = arith.constant 0 : index
    %207 = vector.load %arg1[%c0_30, %c2_31, %c1_32, %c0_33] : memref<2x3x16x16xf32, #tpu.memory_space<vmem>>, vector<1x1x14x16xf32>
    %208 = vector.shape_cast %207 : vector<1x1x14x16xf32> to vector<14x16xf32>
    %209 = vector.extract_strided_slice %208 {offsets = [0, 0], sizes = [14, 14], strides = [1, 1]} : vector<14x16xf32> to vector<14x14xf32>
    %c21 = arith.constant 21 : index
    %210 = memref.load %arg2[%c21] : memref<54xf32, #tpu.memory_space<smem>>
    %211 = vector.broadcast %210 : f32 to vector<14x14xf32>
    %212 = arith.mulf %211, %209 : vector<14x14xf32>
    %213 = arith.addf %202, %212 : vector<14x14xf32>
    %c48 = arith.constant 48 : index
    %214 = memref.load %arg2[%c48] : memref<54xf32, #tpu.memory_space<smem>>
    %215 = vector.broadcast %214 : f32 to vector<14x14xf32>
    %216 = arith.mulf %215, %209 : vector<14x14xf32>
    %217 = arith.addf %206, %216 : vector<14x14xf32>
    %218 = vector.extract_strided_slice %208 {offsets = [0, 1], sizes = [14, 14], strides = [1, 1]} : vector<14x16xf32> to vector<14x14xf32>
    %c22 = arith.constant 22 : index
    %219 = memref.load %arg2[%c22] : memref<54xf32, #tpu.memory_space<smem>>
    %220 = vector.broadcast %219 : f32 to vector<14x14xf32>
    %221 = arith.mulf %220, %218 : vector<14x14xf32>
    %222 = arith.addf %213, %221 : vector<14x14xf32>
    %c49 = arith.constant 49 : index
    %223 = memref.load %arg2[%c49] : memref<54xf32, #tpu.memory_space<smem>>
    %224 = vector.broadcast %223 : f32 to vector<14x14xf32>
    %225 = arith.mulf %224, %218 : vector<14x14xf32>
    %226 = arith.addf %217, %225 : vector<14x14xf32>
    %227 = vector.extract_strided_slice %208 {offsets = [0, 2], sizes = [14, 14], strides = [1, 1]} : vector<14x16xf32> to vector<14x14xf32>
    %c23 = arith.constant 23 : index
    %228 = memref.load %arg2[%c23] : memref<54xf32, #tpu.memory_space<smem>>
    %229 = vector.broadcast %228 : f32 to vector<14x14xf32>
    %230 = arith.mulf %229, %227 : vector<14x14xf32>
    %231 = arith.addf %222, %230 : vector<14x14xf32>
    %c50 = arith.constant 50 : index
    %232 = memref.load %arg2[%c50] : memref<54xf32, #tpu.memory_space<smem>>
    %233 = vector.broadcast %232 : f32 to vector<14x14xf32>
    %234 = arith.mulf %233, %227 : vector<14x14xf32>
    %235 = arith.addf %226, %234 : vector<14x14xf32>
    %c0_34 = arith.constant 0 : index
    %c2_35 = arith.constant 2 : index
    %c2_36 = arith.constant 2 : index
    %c0_37 = arith.constant 0 : index
    %236 = vector.load %arg1[%c0_34, %c2_35, %c2_36, %c0_37] : memref<2x3x16x16xf32, #tpu.memory_space<vmem>>, vector<1x1x14x16xf32>
    %237 = vector.shape_cast %236 : vector<1x1x14x16xf32> to vector<14x16xf32>
    %238 = vector.extract_strided_slice %237 {offsets = [0, 0], sizes = [14, 14], strides = [1, 1]} : vector<14x16xf32> to vector<14x14xf32>
    %c24 = arith.constant 24 : index
    %239 = memref.load %arg2[%c24] : memref<54xf32, #tpu.memory_space<smem>>
    %240 = vector.broadcast %239 : f32 to vector<14x14xf32>
    %241 = arith.mulf %240, %238 : vector<14x14xf32>
    %242 = arith.addf %231, %241 : vector<14x14xf32>
    %c51 = arith.constant 51 : index
    %243 = memref.load %arg2[%c51] : memref<54xf32, #tpu.memory_space<smem>>
    %244 = vector.broadcast %243 : f32 to vector<14x14xf32>
    %245 = arith.mulf %244, %238 : vector<14x14xf32>
    %246 = arith.addf %235, %245 : vector<14x14xf32>
    %247 = vector.extract_strided_slice %237 {offsets = [0, 1], sizes = [14, 14], strides = [1, 1]} : vector<14x16xf32> to vector<14x14xf32>
    %c25 = arith.constant 25 : index
    %248 = memref.load %arg2[%c25] : memref<54xf32, #tpu.memory_space<smem>>
    %249 = vector.broadcast %248 : f32 to vector<14x14xf32>
    %250 = arith.mulf %249, %247 : vector<14x14xf32>
    %251 = arith.addf %242, %250 : vector<14x14xf32>
    %c52 = arith.constant 52 : index
    %252 = memref.load %arg2[%c52] : memref<54xf32, #tpu.memory_space<smem>>
    %253 = vector.broadcast %252 : f32 to vector<14x14xf32>
    %254 = arith.mulf %253, %247 : vector<14x14xf32>
    %255 = arith.addf %246, %254 : vector<14x14xf32>
    %256 = vector.extract_strided_slice %237 {offsets = [0, 2], sizes = [14, 14], strides = [1, 1]} : vector<14x16xf32> to vector<14x14xf32>
    %c26 = arith.constant 26 : index
    %257 = memref.load %arg2[%c26] : memref<54xf32, #tpu.memory_space<smem>>
    %258 = vector.broadcast %257 : f32 to vector<14x14xf32>
    %259 = arith.mulf %258, %256 : vector<14x14xf32>
    %260 = arith.addf %251, %259 : vector<14x14xf32>
    %c53 = arith.constant 53 : index
    %261 = memref.load %arg2[%c53] : memref<54xf32, #tpu.memory_space<smem>>
    %262 = vector.broadcast %261 : f32 to vector<14x14xf32>
    %263 = arith.mulf %262, %256 : vector<14x14xf32>
    %264 = arith.addf %255, %263 : vector<14x14xf32>
    %cst = arith.constant 0.000000e+00 : f32
    %265 = vector.broadcast %cst : f32 to vector<14x14xf32>
    %266 = arith.cmpf oge, %260, %265 : vector<14x14xf32>
    %cst_38 = arith.constant 3.300000e-01 : f32
    %267 = vector.broadcast %cst_38 : f32 to vector<14x14xf32>
    %268 = arith.mulf %267, %260 : vector<14x14xf32>
    %269 = arith.select %266, %260, %268 : vector<14x14xi1>, vector<14x14xf32>
    %cst_39 = arith.constant 0.000000e+00 : f32
    %270 = vector.broadcast %cst_39 : f32 to vector<14x14xf32>
    %271 = arith.cmpf oge, %264, %270 : vector<14x14xf32>
    %cst_40 = arith.constant 3.300000e-01 : f32
    %272 = vector.broadcast %cst_40 : f32 to vector<14x14xf32>
    %273 = arith.mulf %272, %264 : vector<14x14xf32>
    %274 = arith.select %271, %264, %273 : vector<14x14xi1>, vector<14x14xf32>
    %c0_41 = arith.constant 0 : index
    %275 = memref.load %arg4[%c0_41] : memref<4xf32, #tpu.memory_space<smem>>
    %276 = vector.broadcast %275 : f32 to vector<14x14xf32>
    %277 = arith.mulf %276, %269 : vector<14x14xf32>
    %c1_42 = arith.constant 1 : index
    %278 = memref.load %arg4[%c1_42] : memref<4xf32, #tpu.memory_space<smem>>
    %279 = vector.broadcast %278 : f32 to vector<14x14xf32>
    %280 = arith.mulf %279, %274 : vector<14x14xf32>
    %281 = arith.addf %277, %280 : vector<14x14xf32>
    %c0_43 = arith.constant 0 : index
    %c0_44 = arith.constant 0 : index
    %c0_45 = arith.constant 0 : index
    %c0_46 = arith.constant 0 : index
    %282 = vector.load %arg5[%c0_43, %c0_44, %c0_45, %c0_46] : memref<2x2x14x14xf32, #tpu.memory_space<vmem>>, vector<1x1x14x14xf32>
    %283 = vector.shape_cast %282 : vector<1x1x14x14xf32> to vector<14x14xf32>
    %284 = vector.shape_cast %281 : vector<14x14xf32> to vector<1x1x14x14xf32>
    tpu.vector_store %arg5[%c0_43, %c0_44, %c0_45, %c0_46], %284 {strides = array<i32>} : memref<2x2x14x14xf32, #tpu.memory_space<vmem>>, vector<1x1x14x14xf32>,
    %c2_47 = arith.constant 2 : index
    %285 = memref.load %arg4[%c2_47] : memref<4xf32, #tpu.memory_space<smem>>
    %286 = vector.broadcast %285 : f32 to vector<14x14xf32>
    %287 = arith.mulf %286, %269 : vector<14x14xf32>
    %c3_48 = arith.constant 3 : index
    %288 = memref.load %arg4[%c3_48] : memref<4xf32, #tpu.memory_space<smem>>
    %289 = vector.broadcast %288 : f32 to vector<14x14xf32>
    %290 = arith.mulf %289, %274 : vector<14x14xf32>
    %291 = arith.addf %287, %290 : vector<14x14xf32>
    %c0_49 = arith.constant 0 : index
    %c1_50 = arith.constant 1 : index
    %c0_51 = arith.constant 0 : index
    %c0_52 = arith.constant 0 : index
    %292 = vector.load %arg5[%c0_49, %c1_50, %c0_51, %c0_52] : memref<2x2x14x14xf32, #tpu.memory_space<vmem>>, vector<1x1x14x14xf32>
    %293 = vector.shape_cast %292 : vector<1x1x14x14xf32> to vector<14x14xf32>
    %294 = vector.shape_cast %291 : vector<14x14xf32> to vector<1x1x14x14xf32>
    tpu.vector_store %arg5[%c0_49, %c1_50, %c0_51, %c0_52], %294 {strides = array<i32>} : memref<2x2x14x14xf32, #tpu.memory_space<vmem>>, vector<1x1x14x14xf32>,
    %c0_53 = arith.constant 0 : index
    %295 = memref.load %arg3[%c0_53] : memref<2xf32, #tpu.memory_space<smem>>
    %296 = vector.broadcast %295 : f32 to vector<14x14xf32>
    %c1_54 = arith.constant 1 : index
    %297 = memref.load %arg3[%c1_54] : memref<2xf32, #tpu.memory_space<smem>>
    %298 = vector.broadcast %297 : f32 to vector<14x14xf32>
    %c1_55 = arith.constant 1 : index
    %c0_56 = arith.constant 0 : index
    %c0_57 = arith.constant 0 : index
    %c0_58 = arith.constant 0 : index
    %299 = vector.load %arg1[%c1_55, %c0_56, %c0_57, %c0_58] : memref<2x3x16x16xf32, #tpu.memory_space<vmem>>, vector<1x1x14x16xf32>
    %300 = vector.shape_cast %299 : vector<1x1x14x16xf32> to vector<14x16xf32>
    %301 = vector.extract_strided_slice %300 {offsets = [0, 0], sizes = [14, 14], strides = [1, 1]} : vector<14x16xf32> to vector<14x14xf32>
    %c0_59 = arith.constant 0 : index
    %302 = memref.load %arg2[%c0_59] : memref<54xf32, #tpu.memory_space<smem>>
    %303 = vector.broadcast %302 : f32 to vector<14x14xf32>
    %304 = arith.mulf %303, %301 : vector<14x14xf32>
    %305 = arith.addf %296, %304 : vector<14x14xf32>
    %c27_60 = arith.constant 27 : index
    %306 = memref.load %arg2[%c27_60] : memref<54xf32, #tpu.memory_space<smem>>
    %307 = vector.broadcast %306 : f32 to vector<14x14xf32>
    %308 = arith.mulf %307, %301 : vector<14x14xf32>
    %309 = arith.addf %298, %308 : vector<14x14xf32>
    %310 = vector.extract_strided_slice %300 {offsets = [0, 1], sizes = [14, 14], strides = [1, 1]} : vector<14x16xf32> to vector<14x14xf32>
    %c1_61 = arith.constant 1 : index
    %311 = memref.load %arg2[%c1_61] : memref<54xf32, #tpu.memory_space<smem>>
    %312 = vector.broadcast %311 : f32 to vector<14x14xf32>
    %313 = arith.mulf %312, %310 : vector<14x14xf32>
    %314 = arith.addf %305, %313 : vector<14x14xf32>
    %c28_62 = arith.constant 28 : index
    %315 = memref.load %arg2[%c28_62] : memref<54xf32, #tpu.memory_space<smem>>
    %316 = vector.broadcast %315 : f32 to vector<14x14xf32>
    %317 = arith.mulf %316, %310 : vector<14x14xf32>
    %318 = arith.addf %309, %317 : vector<14x14xf32>
    %319 = vector.extract_strided_slice %300 {offsets = [0, 2], sizes = [14, 14], strides = [1, 1]} : vector<14x16xf32> to vector<14x14xf32>
    %c2_63 = arith.constant 2 : index
    %320 = memref.load %arg2[%c2_63] : memref<54xf32, #tpu.memory_space<smem>>
    %321 = vector.broadcast %320 : f32 to vector<14x14xf32>
    %322 = arith.mulf %321, %319 : vector<14x14xf32>
    %323 = arith.addf %314, %322 : vector<14x14xf32>
    %c29_64 = arith.constant 29 : index
    %324 = memref.load %arg2[%c29_64] : memref<54xf32, #tpu.memory_space<smem>>
    %325 = vector.broadcast %324 : f32 to vector<14x14xf32>
    %326 = arith.mulf %325, %319 : vector<14x14xf32>
    %327 = arith.addf %318, %326 : vector<14x14xf32>
    %c1_65 = arith.constant 1 : index
    %c0_66 = arith.constant 0 : index
    %c1_67 = arith.constant 1 : index
    %c0_68 = arith.constant 0 : index
    %328 = vector.load %arg1[%c1_65, %c0_66, %c1_67, %c0_68] : memref<2x3x16x16xf32, #tpu.memory_space<vmem>>, vector<1x1x14x16xf32>
    %329 = vector.shape_cast %328 : vector<1x1x14x16xf32> to vector<14x16xf32>
    %330 = vector.extract_strided_slice %329 {offsets = [0, 0], sizes = [14, 14], strides = [1, 1]} : vector<14x16xf32> to vector<14x14xf32>
    %c3_69 = arith.constant 3 : index
    %331 = memref.load %arg2[%c3_69] : memref<54xf32, #tpu.memory_space<smem>>
    %332 = vector.broadcast %331 : f32 to vector<14x14xf32>
    %333 = arith.mulf %332, %330 : vector<14x14xf32>
    %334 = arith.addf %323, %333 : vector<14x14xf32>
    %c30_70 = arith.constant 30 : index
    %335 = memref.load %arg2[%c30_70] : memref<54xf32, #tpu.memory_space<smem>>
    %336 = vector.broadcast %335 : f32 to vector<14x14xf32>
    %337 = arith.mulf %336, %330 : vector<14x14xf32>
    %338 = arith.addf %327, %337 : vector<14x14xf32>
    %339 = vector.extract_strided_slice %329 {offsets = [0, 1], sizes = [14, 14], strides = [1, 1]} : vector<14x16xf32> to vector<14x14xf32>
    %c4_71 = arith.constant 4 : index
    %340 = memref.load %arg2[%c4_71] : memref<54xf32, #tpu.memory_space<smem>>
    %341 = vector.broadcast %340 : f32 to vector<14x14xf32>
    %342 = arith.mulf %341, %339 : vector<14x14xf32>
    %343 = arith.addf %334, %342 : vector<14x14xf32>
    %c31_72 = arith.constant 31 : index
    %344 = memref.load %arg2[%c31_72] : memref<54xf32, #tpu.memory_space<smem>>
    %345 = vector.broadcast %344 : f32 to vector<14x14xf32>
    %346 = arith.mulf %345, %339 : vector<14x14xf32>
    %347 = arith.addf %338, %346 : vector<14x14xf32>
    %348 = vector.extract_strided_slice %329 {offsets = [0, 2], sizes = [14, 14], strides = [1, 1]} : vector<14x16xf32> to vector<14x14xf32>
    %c5_73 = arith.constant 5 : index
    %349 = memref.load %arg2[%c5_73] : memref<54xf32, #tpu.memory_space<smem>>
    %350 = vector.broadcast %349 : f32 to vector<14x14xf32>
    %351 = arith.mulf %350, %348 : vector<14x14xf32>
    %352 = arith.addf %343, %351 : vector<14x14xf32>
    %c32_74 = arith.constant 32 : index
    %353 = memref.load %arg2[%c32_74] : memref<54xf32, #tpu.memory_space<smem>>
    %354 = vector.broadcast %353 : f32 to vector<14x14xf32>
    %355 = arith.mulf %354, %348 : vector<14x14xf32>
    %356 = arith.addf %347, %355 : vector<14x14xf32>
    %c1_75 = arith.constant 1 : index
    %c0_76 = arith.constant 0 : index
    %c2_77 = arith.constant 2 : index
    %c0_78 = arith.constant 0 : index
    %357 = vector.load %arg1[%c1_75, %c0_76, %c2_77, %c0_78] : memref<2x3x16x16xf32, #tpu.memory_space<vmem>>, vector<1x1x14x16xf32>
    %358 = vector.shape_cast %357 : vector<1x1x14x16xf32> to vector<14x16xf32>
    %359 = vector.extract_strided_slice %358 {offsets = [0, 0], sizes = [14, 14], strides = [1, 1]} : vector<14x16xf32> to vector<14x14xf32>
    %c6_79 = arith.constant 6 : index
    %360 = memref.load %arg2[%c6_79] : memref<54xf32, #tpu.memory_space<smem>>
    %361 = vector.broadcast %360 : f32 to vector<14x14xf32>
    %362 = arith.mulf %361, %359 : vector<14x14xf32>
    %363 = arith.addf %352, %362 : vector<14x14xf32>
    %c33_80 = arith.constant 33 : index
    %364 = memref.load %arg2[%c33_80] : memref<54xf32, #tpu.memory_space<smem>>
    %365 = vector.broadcast %364 : f32 to vector<14x14xf32>
    %366 = arith.mulf %365, %359 : vector<14x14xf32>
    %367 = arith.addf %356, %366 : vector<14x14xf32>
    %368 = vector.extract_strided_slice %358 {offsets = [0, 1], sizes = [14, 14], strides = [1, 1]} : vector<14x16xf32> to vector<14x14xf32>
    %c7_81 = arith.constant 7 : index
    %369 = memref.load %arg2[%c7_81] : memref<54xf32, #tpu.memory_space<smem>>
    %370 = vector.broadcast %369 : f32 to vector<14x14xf32>
    %371 = arith.mulf %370, %368 : vector<14x14xf32>
    %372 = arith.addf %363, %371 : vector<14x14xf32>
    %c34_82 = arith.constant 34 : index
    %373 = memref.load %arg2[%c34_82] : memref<54xf32, #tpu.memory_space<smem>>
    %374 = vector.broadcast %373 : f32 to vector<14x14xf32>
    %375 = arith.mulf %374, %368 : vector<14x14xf32>
    %376 = arith.addf %367, %375 : vector<14x14xf32>
    %377 = vector.extract_strided_slice %358 {offsets = [0, 2], sizes = [14, 14], strides = [1, 1]} : vector<14x16xf32> to vector<14x14xf32>
    %c8_83 = arith.constant 8 : index
    %378 = memref.load %arg2[%c8_83] : memref<54xf32, #tpu.memory_space<smem>>
    %379 = vector.broadcast %378 : f32 to vector<14x14xf32>
    %380 = arith.mulf %379, %377 : vector<14x14xf32>
    %381 = arith.addf %372, %380 : vector<14x14xf32>
    %c35_84 = arith.constant 35 : index
    %382 = memref.load %arg2[%c35_84] : memref<54xf32, #tpu.memory_space<smem>>
    %383 = vector.broadcast %382 : f32 to vector<14x14xf32>
    %384 = arith.mulf %383, %377 : vector<14x14xf32>
    %385 = arith.addf %376, %384 : vector<14x14xf32>
    %c1_85 = arith.constant 1 : index
    %c1_86 = arith.constant 1 : index
    %c0_87 = arith.constant 0 : index
    %c0_88 = arith.constant 0 : index
    %386 = vector.load %arg1[%c1_85, %c1_86, %c0_87, %c0_88] : memref<2x3x16x16xf32, #tpu.memory_space<vmem>>, vector<1x1x14x16xf32>
    %387 = vector.shape_cast %386 : vector<1x1x14x16xf32> to vector<14x16xf32>
    %388 = vector.extract_strided_slice %387 {offsets = [0, 0], sizes = [14, 14], strides = [1, 1]} : vector<14x16xf32> to vector<14x14xf32>
    %c9_89 = arith.constant 9 : index
    %389 = memref.load %arg2[%c9_89] : memref<54xf32, #tpu.memory_space<smem>>
    %390 = vector.broadcast %389 : f32 to vector<14x14xf32>
    %391 = arith.mulf %390, %388 : vector<14x14xf32>
    %392 = arith.addf %381, %391 : vector<14x14xf32>
    %c36_90 = arith.constant 36 : index
    %393 = memref.load %arg2[%c36_90] : memref<54xf32, #tpu.memory_space<smem>>
    %394 = vector.broadcast %393 : f32 to vector<14x14xf32>
    %395 = arith.mulf %394, %388 : vector<14x14xf32>
    %396 = arith.addf %385, %395 : vector<14x14xf32>
    %397 = vector.extract_strided_slice %387 {offsets = [0, 1], sizes = [14, 14], strides = [1, 1]} : vector<14x16xf32> to vector<14x14xf32>
    %c10_91 = arith.constant 10 : index
    %398 = memref.load %arg2[%c10_91] : memref<54xf32, #tpu.memory_space<smem>>
    %399 = vector.broadcast %398 : f32 to vector<14x14xf32>
    %400 = arith.mulf %399, %397 : vector<14x14xf32>
    %401 = arith.addf %392, %400 : vector<14x14xf32>
    %c37_92 = arith.constant 37 : index
    %402 = memref.load %arg2[%c37_92] : memref<54xf32, #tpu.memory_space<smem>>
    %403 = vector.broadcast %402 : f32 to vector<14x14xf32>
    %404 = arith.mulf %403, %397 : vector<14x14xf32>
    %405 = arith.addf %396, %404 : vector<14x14xf32>
    %406 = vector.extract_strided_slice %387 {offsets = [0, 2], sizes = [14, 14], strides = [1, 1]} : vector<14x16xf32> to vector<14x14xf32>
    %c11_93 = arith.constant 11 : index
    %407 = memref.load %arg2[%c11_93] : memref<54xf32, #tpu.memory_space<smem>>
    %408 = vector.broadcast %407 : f32 to vector<14x14xf32>
    %409 = arith.mulf %408, %406 : vector<14x14xf32>
    %410 = arith.addf %401, %409 : vector<14x14xf32>
    %c38_94 = arith.constant 38 : index
    %411 = memref.load %arg2[%c38_94] : memref<54xf32, #tpu.memory_space<smem>>
    %412 = vector.broadcast %411 : f32 to vector<14x14xf32>
    %413 = arith.mulf %412, %406 : vector<14x14xf32>
    %414 = arith.addf %405, %413 : vector<14x14xf32>
    %c1_95 = arith.constant 1 : index
    %c1_96 = arith.constant 1 : index
    %c1_97 = arith.constant 1 : index
    %c0_98 = arith.constant 0 : index
    %415 = vector.load %arg1[%c1_95, %c1_96, %c1_97, %c0_98] : memref<2x3x16x16xf32, #tpu.memory_space<vmem>>, vector<1x1x14x16xf32>
    %416 = vector.shape_cast %415 : vector<1x1x14x16xf32> to vector<14x16xf32>
    %417 = vector.extract_strided_slice %416 {offsets = [0, 0], sizes = [14, 14], strides = [1, 1]} : vector<14x16xf32> to vector<14x14xf32>
    %c12_99 = arith.constant 12 : index
    %418 = memref.load %arg2[%c12_99] : memref<54xf32, #tpu.memory_space<smem>>
    %419 = vector.broadcast %418 : f32 to vector<14x14xf32>
    %420 = arith.mulf %419, %417 : vector<14x14xf32>
    %421 = arith.addf %410, %420 : vector<14x14xf32>
    %c39_100 = arith.constant 39 : index
    %422 = memref.load %arg2[%c39_100] : memref<54xf32, #tpu.memory_space<smem>>
    %423 = vector.broadcast %422 : f32 to vector<14x14xf32>
    %424 = arith.mulf %423, %417 : vector<14x14xf32>
    %425 = arith.addf %414, %424 : vector<14x14xf32>
    %426 = vector.extract_strided_slice %416 {offsets = [0, 1], sizes = [14, 14], strides = [1, 1]} : vector<14x16xf32> to vector<14x14xf32>
    %c13_101 = arith.constant 13 : index
    %427 = memref.load %arg2[%c13_101] : memref<54xf32, #tpu.memory_space<smem>>
    %428 = vector.broadcast %427 : f32 to vector<14x14xf32>
    %429 = arith.mulf %428, %426 : vector<14x14xf32>
    %430 = arith.addf %421, %429 : vector<14x14xf32>
    %c40_102 = arith.constant 40 : index
    %431 = memref.load %arg2[%c40_102] : memref<54xf32, #tpu.memory_space<smem>>
    %432 = vector.broadcast %431 : f32 to vector<14x14xf32>
    %433 = arith.mulf %432, %426 : vector<14x14xf32>
    %434 = arith.addf %425, %433 : vector<14x14xf32>
    %435 = vector.extract_strided_slice %416 {offsets = [0, 2], sizes = [14, 14], strides = [1, 1]} : vector<14x16xf32> to vector<14x14xf32>
    %c14_103 = arith.constant 14 : index
    %436 = memref.load %arg2[%c14_103] : memref<54xf32, #tpu.memory_space<smem>>
    %437 = vector.broadcast %436 : f32 to vector<14x14xf32>
    %438 = arith.mulf %437, %435 : vector<14x14xf32>
    %439 = arith.addf %430, %438 : vector<14x14xf32>
    %c41_104 = arith.constant 41 : index
    %440 = memref.load %arg2[%c41_104] : memref<54xf32, #tpu.memory_space<smem>>
    %441 = vector.broadcast %440 : f32 to vector<14x14xf32>
    %442 = arith.mulf %441, %435 : vector<14x14xf32>
    %443 = arith.addf %434, %442 : vector<14x14xf32>
    %c1_105 = arith.constant 1 : index
    %c1_106 = arith.constant 1 : index
    %c2_107 = arith.constant 2 : index
    %c0_108 = arith.constant 0 : index
    %444 = vector.load %arg1[%c1_105, %c1_106, %c2_107, %c0_108] : memref<2x3x16x16xf32, #tpu.memory_space<vmem>>, vector<1x1x14x16xf32>
    %445 = vector.shape_cast %444 : vector<1x1x14x16xf32> to vector<14x16xf32>
    %446 = vector.extract_strided_slice %445 {offsets = [0, 0], sizes = [14, 14], strides = [1, 1]} : vector<14x16xf32> to vector<14x14xf32>
    %c15_109 = arith.constant 15 : index
    %447 = memref.load %arg2[%c15_109] : memref<54xf32, #tpu.memory_space<smem>>
    %448 = vector.broadcast %447 : f32 to vector<14x14xf32>
    %449 = arith.mulf %448, %446 : vector<14x14xf32>
    %450 = arith.addf %439, %449 : vector<14x14xf32>
    %c42_110 = arith.constant 42 : index
    %451 = memref.load %arg2[%c42_110] : memref<54xf32, #tpu.memory_space<smem>>
    %452 = vector.broadcast %451 : f32 to vector<14x14xf32>
    %453 = arith.mulf %452, %446 : vector<14x14xf32>
    %454 = arith.addf %443, %453 : vector<14x14xf32>
    %455 = vector.extract_strided_slice %445 {offsets = [0, 1], sizes = [14, 14], strides = [1, 1]} : vector<14x16xf32> to vector<14x14xf32>
    %c16_111 = arith.constant 16 : index
    %456 = memref.load %arg2[%c16_111] : memref<54xf32, #tpu.memory_space<smem>>
    %457 = vector.broadcast %456 : f32 to vector<14x14xf32>
    %458 = arith.mulf %457, %455 : vector<14x14xf32>
    %459 = arith.addf %450, %458 : vector<14x14xf32>
    %c43_112 = arith.constant 43 : index
    %460 = memref.load %arg2[%c43_112] : memref<54xf32, #tpu.memory_space<smem>>
    %461 = vector.broadcast %460 : f32 to vector<14x14xf32>
    %462 = arith.mulf %461, %455 : vector<14x14xf32>
    %463 = arith.addf %454, %462 : vector<14x14xf32>
    %464 = vector.extract_strided_slice %445 {offsets = [0, 2], sizes = [14, 14], strides = [1, 1]} : vector<14x16xf32> to vector<14x14xf32>
    %c17_113 = arith.constant 17 : index
    %465 = memref.load %arg2[%c17_113] : memref<54xf32, #tpu.memory_space<smem>>
    %466 = vector.broadcast %465 : f32 to vector<14x14xf32>
    %467 = arith.mulf %466, %464 : vector<14x14xf32>
    %468 = arith.addf %459, %467 : vector<14x14xf32>
    %c44_114 = arith.constant 44 : index
    %469 = memref.load %arg2[%c44_114] : memref<54xf32, #tpu.memory_space<smem>>
    %470 = vector.broadcast %469 : f32 to vector<14x14xf32>
    %471 = arith.mulf %470, %464 : vector<14x14xf32>
    %472 = arith.addf %463, %471 : vector<14x14xf32>
    %c1_115 = arith.constant 1 : index
    %c2_116 = arith.constant 2 : index
    %c0_117 = arith.constant 0 : index
    %c0_118 = arith.constant 0 : index
    %473 = vector.load %arg1[%c1_115, %c2_116, %c0_117, %c0_118] : memref<2x3x16x16xf32, #tpu.memory_space<vmem>>, vector<1x1x14x16xf32>
    %474 = vector.shape_cast %473 : vector<1x1x14x16xf32> to vector<14x16xf32>
    %475 = vector.extract_strided_slice %474 {offsets = [0, 0], sizes = [14, 14], strides = [1, 1]} : vector<14x16xf32> to vector<14x14xf32>
    %c18_119 = arith.constant 18 : index
    %476 = memref.load %arg2[%c18_119] : memref<54xf32, #tpu.memory_space<smem>>
    %477 = vector.broadcast %476 : f32 to vector<14x14xf32>
    %478 = arith.mulf %477, %475 : vector<14x14xf32>
    %479 = arith.addf %468, %478 : vector<14x14xf32>
    %c45_120 = arith.constant 45 : index
    %480 = memref.load %arg2[%c45_120] : memref<54xf32, #tpu.memory_space<smem>>
    %481 = vector.broadcast %480 : f32 to vector<14x14xf32>
    %482 = arith.mulf %481, %475 : vector<14x14xf32>
    %483 = arith.addf %472, %482 : vector<14x14xf32>
    %484 = vector.extract_strided_slice %474 {offsets = [0, 1], sizes = [14, 14], strides = [1, 1]} : vector<14x16xf32> to vector<14x14xf32>
    %c19_121 = arith.constant 19 : index
    %485 = memref.load %arg2[%c19_121] : memref<54xf32, #tpu.memory_space<smem>>
    %486 = vector.broadcast %485 : f32 to vector<14x14xf32>
    %487 = arith.mulf %486, %484 : vector<14x14xf32>
    %488 = arith.addf %479, %487 : vector<14x14xf32>
    %c46_122 = arith.constant 46 : index
    %489 = memref.load %arg2[%c46_122] : memref<54xf32, #tpu.memory_space<smem>>
    %490 = vector.broadcast %489 : f32 to vector<14x14xf32>
    %491 = arith.mulf %490, %484 : vector<14x14xf32>
    %492 = arith.addf %483, %491 : vector<14x14xf32>
    %493 = vector.extract_strided_slice %474 {offsets = [0, 2], sizes = [14, 14], strides = [1, 1]} : vector<14x16xf32> to vector<14x14xf32>
    %c20_123 = arith.constant 20 : index
    %494 = memref.load %arg2[%c20_123] : memref<54xf32, #tpu.memory_space<smem>>
    %495 = vector.broadcast %494 : f32 to vector<14x14xf32>
    %496 = arith.mulf %495, %493 : vector<14x14xf32>
    %497 = arith.addf %488, %496 : vector<14x14xf32>
    %c47_124 = arith.constant 47 : index
    %498 = memref.load %arg2[%c47_124] : memref<54xf32, #tpu.memory_space<smem>>
    %499 = vector.broadcast %498 : f32 to vector<14x14xf32>
    %500 = arith.mulf %499, %493 : vector<14x14xf32>
    %501 = arith.addf %492, %500 : vector<14x14xf32>
    %c1_125 = arith.constant 1 : index
    %c2_126 = arith.constant 2 : index
    %c1_127 = arith.constant 1 : index
    %c0_128 = arith.constant 0 : index
    %502 = vector.load %arg1[%c1_125, %c2_126, %c1_127, %c0_128] : memref<2x3x16x16xf32, #tpu.memory_space<vmem>>, vector<1x1x14x16xf32>
    %503 = vector.shape_cast %502 : vector<1x1x14x16xf32> to vector<14x16xf32>
    %504 = vector.extract_strided_slice %503 {offsets = [0, 0], sizes = [14, 14], strides = [1, 1]} : vector<14x16xf32> to vector<14x14xf32>
    %c21_129 = arith.constant 21 : index
    %505 = memref.load %arg2[%c21_129] : memref<54xf32, #tpu.memory_space<smem>>
    %506 = vector.broadcast %505 : f32 to vector<14x14xf32>
    %507 = arith.mulf %506, %504 : vector<14x14xf32>
    %508 = arith.addf %497, %507 : vector<14x14xf32>
    %c48_130 = arith.constant 48 : index
    %509 = memref.load %arg2[%c48_130] : memref<54xf32, #tpu.memory_space<smem>>
    %510 = vector.broadcast %509 : f32 to vector<14x14xf32>
    %511 = arith.mulf %510, %504 : vector<14x14xf32>
    %512 = arith.addf %501, %511 : vector<14x14xf32>
    %513 = vector.extract_strided_slice %503 {offsets = [0, 1], sizes = [14, 14], strides = [1, 1]} : vector<14x16xf32> to vector<14x14xf32>
    %c22_131 = arith.constant 22 : index
    %514 = memref.load %arg2[%c22_131] : memref<54xf32, #tpu.memory_space<smem>>
    %515 = vector.broadcast %514 : f32 to vector<14x14xf32>
    %516 = arith.mulf %515, %513 : vector<14x14xf32>
    %517 = arith.addf %508, %516 : vector<14x14xf32>
    %c49_132 = arith.constant 49 : index
    %518 = memref.load %arg2[%c49_132] : memref<54xf32, #tpu.memory_space<smem>>
    %519 = vector.broadcast %518 : f32 to vector<14x14xf32>
    %520 = arith.mulf %519, %513 : vector<14x14xf32>
    %521 = arith.addf %512, %520 : vector<14x14xf32>
    %522 = vector.extract_strided_slice %503 {offsets = [0, 2], sizes = [14, 14], strides = [1, 1]} : vector<14x16xf32> to vector<14x14xf32>
    %c23_133 = arith.constant 23 : index
    %523 = memref.load %arg2[%c23_133] : memref<54xf32, #tpu.memory_space<smem>>
    %524 = vector.broadcast %523 : f32 to vector<14x14xf32>
    %525 = arith.mulf %524, %522 : vector<14x14xf32>
    %526 = arith.addf %517, %525 : vector<14x14xf32>
    %c50_134 = arith.constant 50 : index
    %527 = memref.load %arg2[%c50_134] : memref<54xf32, #tpu.memory_space<smem>>
    %528 = vector.broadcast %527 : f32 to vector<14x14xf32>
    %529 = arith.mulf %528, %522 : vector<14x14xf32>
    %530 = arith.addf %521, %529 : vector<14x14xf32>
    %c1_135 = arith.constant 1 : index
    %c2_136 = arith.constant 2 : index
    %c2_137 = arith.constant 2 : index
    %c0_138 = arith.constant 0 : index
    %531 = vector.load %arg1[%c1_135, %c2_136, %c2_137, %c0_138] : memref<2x3x16x16xf32, #tpu.memory_space<vmem>>, vector<1x1x14x16xf32>
    %532 = vector.shape_cast %531 : vector<1x1x14x16xf32> to vector<14x16xf32>
    %533 = vector.extract_strided_slice %532 {offsets = [0, 0], sizes = [14, 14], strides = [1, 1]} : vector<14x16xf32> to vector<14x14xf32>
    %c24_139 = arith.constant 24 : index
    %534 = memref.load %arg2[%c24_139] : memref<54xf32, #tpu.memory_space<smem>>
    %535 = vector.broadcast %534 : f32 to vector<14x14xf32>
    %536 = arith.mulf %535, %533 : vector<14x14xf32>
    %537 = arith.addf %526, %536 : vector<14x14xf32>
    %c51_140 = arith.constant 51 : index
    %538 = memref.load %arg2[%c51_140] : memref<54xf32, #tpu.memory_space<smem>>
    %539 = vector.broadcast %538 : f32 to vector<14x14xf32>
    %540 = arith.mulf %539, %533 : vector<14x14xf32>
    %541 = arith.addf %530, %540 : vector<14x14xf32>
    %542 = vector.extract_strided_slice %532 {offsets = [0, 1], sizes = [14, 14], strides = [1, 1]} : vector<14x16xf32> to vector<14x14xf32>
    %c25_141 = arith.constant 25 : index
    %543 = memref.load %arg2[%c25_141] : memref<54xf32, #tpu.memory_space<smem>>
    %544 = vector.broadcast %543 : f32 to vector<14x14xf32>
    %545 = arith.mulf %544, %542 : vector<14x14xf32>
    %546 = arith.addf %537, %545 : vector<14x14xf32>
    %c52_142 = arith.constant 52 : index
    %547 = memref.load %arg2[%c52_142] : memref<54xf32, #tpu.memory_space<smem>>
    %548 = vector.broadcast %547 : f32 to vector<14x14xf32>
    %549 = arith.mulf %548, %542 : vector<14x14xf32>
    %550 = arith.addf %541, %549 : vector<14x14xf32>
    %551 = vector.extract_strided_slice %532 {offsets = [0, 2], sizes = [14, 14], strides = [1, 1]} : vector<14x16xf32> to vector<14x14xf32>
    %c26_143 = arith.constant 26 : index
    %552 = memref.load %arg2[%c26_143] : memref<54xf32, #tpu.memory_space<smem>>
    %553 = vector.broadcast %552 : f32 to vector<14x14xf32>
    %554 = arith.mulf %553, %551 : vector<14x14xf32>
    %555 = arith.addf %546, %554 : vector<14x14xf32>
    %c53_144 = arith.constant 53 : index
    %556 = memref.load %arg2[%c53_144] : memref<54xf32, #tpu.memory_space<smem>>
    %557 = vector.broadcast %556 : f32 to vector<14x14xf32>
    %558 = arith.mulf %557, %551 : vector<14x14xf32>
    %559 = arith.addf %550, %558 : vector<14x14xf32>
    %cst_145 = arith.constant 0.000000e+00 : f32
    %560 = vector.broadcast %cst_145 : f32 to vector<14x14xf32>
    %561 = arith.cmpf oge, %555, %560 : vector<14x14xf32>
    %cst_146 = arith.constant 3.300000e-01 : f32
    %562 = vector.broadcast %cst_146 : f32 to vector<14x14xf32>
    %563 = arith.mulf %562, %555 : vector<14x14xf32>
    %564 = arith.select %561, %555, %563 : vector<14x14xi1>, vector<14x14xf32>
    %cst_147 = arith.constant 0.000000e+00 : f32
    %565 = vector.broadcast %cst_147 : f32 to vector<14x14xf32>
    %566 = arith.cmpf oge, %559, %565 : vector<14x14xf32>
    %cst_148 = arith.constant 3.300000e-01 : f32
    %567 = vector.broadcast %cst_148 : f32 to vector<14x14xf32>
    %568 = arith.mulf %567, %559 : vector<14x14xf32>
    %569 = arith.select %566, %559, %568 : vector<14x14xi1>, vector<14x14xf32>
    %c0_149 = arith.constant 0 : index
    %570 = memref.load %arg4[%c0_149] : memref<4xf32, #tpu.memory_space<smem>>
    %571 = vector.broadcast %570 : f32 to vector<14x14xf32>
    %572 = arith.mulf %571, %564 : vector<14x14xf32>
    %c1_150 = arith.constant 1 : index
    %573 = memref.load %arg4[%c1_150] : memref<4xf32, #tpu.memory_space<smem>>
    %574 = vector.broadcast %573 : f32 to vector<14x14xf32>
    %575 = arith.mulf %574, %569 : vector<14x14xf32>
    %576 = arith.addf %572, %575 : vector<14x14xf32>
    %c1_151 = arith.constant 1 : index
    %c0_152 = arith.constant 0 : index
    %c0_153 = arith.constant 0 : index
    %c0_154 = arith.constant 0 : index
    %577 = vector.load %arg5[%c1_151, %c0_152, %c0_153, %c0_154] : memref<2x2x14x14xf32, #tpu.memory_space<vmem>>, vector<1x1x14x14xf32>
    %578 = vector.shape_cast %577 : vector<1x1x14x14xf32> to vector<14x14xf32>
    %579 = vector.shape_cast %576 : vector<14x14xf32> to vector<1x1x14x14xf32>
    tpu.vector_store %arg5[%c1_151, %c0_152, %c0_153, %c0_154], %579 {strides = array<i32>} : memref<2x2x14x14xf32, #tpu.memory_space<vmem>>, vector<1x1x14x14xf32>,
    %c2_155 = arith.constant 2 : index
    %580 = memref.load %arg4[%c2_155] : memref<4xf32, #tpu.memory_space<smem>>
    %581 = vector.broadcast %580 : f32 to vector<14x14xf32>
    %582 = arith.mulf %581, %564 : vector<14x14xf32>
    %c3_156 = arith.constant 3 : index
    %583 = memref.load %arg4[%c3_156] : memref<4xf32, #tpu.memory_space<smem>>
    %584 = vector.broadcast %583 : f32 to vector<14x14xf32>
    %585 = arith.mulf %584, %569 : vector<14x14xf32>
    %586 = arith.addf %582, %585 : vector<14x14xf32>
    %c1_157 = arith.constant 1 : index
    %c1_158 = arith.constant 1 : index
    %c0_159 = arith.constant 0 : index
    %c0_160 = arith.constant 0 : index
    %587 = vector.load %arg5[%c1_157, %c1_158, %c0_159, %c0_160] : memref<2x2x14x14xf32, #tpu.memory_space<vmem>>, vector<1x1x14x14xf32>
    %588 = vector.shape_cast %587 : vector<1x1x14x14xf32> to vector<14x14xf32>
    %589 = vector.shape_cast %586 : vector<14x14xf32> to vector<1x1x14x14xf32>
    tpu.vector_store %arg5[%c1_157, %c1_158, %c0_159, %c0_160], %589 {strides = array<i32>} : memref<2x2x14x14xf32, #tpu.memory_space<vmem>>, vector<1x1x14x14xf32>,
    return
  }
  func.func @transform_0(%arg0: i32) -> (i32, i32, i32, i32) {
    %c0_i32 = arith.constant 0 : i32
    %c0_i32_0 = arith.constant 0 : i32
    %c0_i32_1 = arith.constant 0 : i32
    %c0_i32_2 = arith.constant 0 : i32
    return %arg0, %c0_i32, %c0_i32_0, %c0_i32_1 : i32, i32, i32, i32
  }
  func.func @transform_1(%arg0: i32) -> i32 {
    %c0_i32 = arith.constant 0 : i32
    %c0_i32_0 = arith.constant 0 : i32
    return %c0_i32 : i32
  }
  func.func @transform_2(%arg0: i32) -> i32 {
    %c0_i32 = arith.constant 0 : i32
    %c0_i32_0 = arith.constant 0 : i32
    return %c0_i32 : i32
  }
  func.func @transform_3(%arg0: i32) -> i32 {
    %c0_i32 = arith.constant 0 : i32
    %c0_i32_0 = arith.constant 0 : i32
    return %c0_i32 : i32
  }
  func.func @transform_4(%arg0: i32) -> (i32, i32, i32, i32) {
    %c0_i32 = arith.constant 0 : i32
    %c0_i32_0 = arith.constant 0 : i32
    %c0_i32_1 = arith.constant 0 : i32
    %c0_i32_2 = arith.constant 0 : i32
    return %arg0, %c0_i32, %c0_i32_0, %c0_i32_1 : i32, i32, i32, i32
  }
}

</mosaic_0001>

<llo_original>
// kernel: tpu_custom_call.1
$region0: #{tpu_custom_call.1}
  #allocation0 [shape = 'u32[]', space=smem, size = 0x4, offset = 0x4, fixed_abs, tag = 'smem constant byte address 0x4 - core index']
  #allocation1 [shape = 'u32[72,128]{1,0:T(1,128)}', space=vmem, size = 0x9000, scoped, tag = 'internal scratch']
  %s0 = inlined_call_operand.hbm [shape: f32[2,3,16,16], index: 0, kind: input, shape index: {}]
  %s1 = inlined_call_operand.hbm [shape: f32[54], index: 1, kind: input, shape index: {}]
  %s2 = inlined_call_operand.vmem [shape: f32[2], index: 2, kind: input, shape index: {}]
  %s3 = inlined_call_operand.vmem [shape: f32[4], index: 3, kind: input, shape index: {}]
  %s4 = inlined_call_operand.vmem [shape: f32[2,2,14,14], index: 4, kind: output, shape index: {}]
  %s5 = sld [smem:[#allocation0]]
  $region42: #{tpu_custom_call.1} parent=0
    _
  %s7 = ssub.s32 1, %s5
  %s8 = scalar_select 0, %s7, %s5
  $region1: #{tpu_custom_call.1} parent=0
    #allocation2 [shape = 'u8[49152]{0}', space=vmem, size = 0xc000, scoped, tag = 'input window, operand 0, single buffered']
    #allocation3 [shape = 's32[1]{0}', space=sflag, size = 0x4, scoped, tag = 'scoped memory for tpu_custom_call.1']
    #allocation4 [shape = 's32[1]{0}', space=sflag, size = 0x4, scoped, tag = 'scoped memory for tpu_custom_call.1']
    #allocation5 [shape = 's32[1]{0}', space=sflag, size = 0x4, scoped, tag = 'scoped memory for tpu_custom_call.1']
    #allocation6 [shape = 'u8[512]{0}', space=smem, size = 0x200, scoped, tag = 'input window, operand 1, single buffered']
    #allocation7 [shape = 'u8[512]{0}', space=smem, size = 0x200, scoped, tag = 'input window, operand 2, single buffered']
    #allocation8 [shape = 'u8[512]{0}', space=smem, size = 0x200, scoped, tag = 'input window, operand 3, single buffered']
    #allocation9 [shape = 's32[1]{0}', space=sflag, size = 0x4, scoped, tag = 'scoped memory for tpu_custom_call.1']
    %9 = vsyncpa [#allocation3], 0
    %10 = vsyncpa [#allocation4], 0
    %11 = vsyncpa [#allocation5], 0
    %12 = vsyncpa [#allocation9], 0
    // Predicated region
    $region2: #{tpu_custom_call.1} parent=1 // pred_check
      _
    $region3: #{tpu_custom_call.1} parent=1 // pred_check_branch
      %14 = sbr.rel (0) target = $region5
    $region4: #{tpu_custom_call.1} parent=1 // pred_region
      %16 = vsyncadd [#allocation3], 0
      %s17 = sshll.u32 %s0, 4
      %s18 = int_to_ptr.hbm [resolvable:$true] %s17
      %s19 = sshll.u32 [#allocation2], 4
      %s20 = int_to_ptr.vmem [resolvable:$true] %s19
      %25 = dma.hbm_to_vmem [thread:$0]  %s18, 1536, %s20, [#allocation3], 128, 128, 8
    $region5: #{tpu_custom_call.1} parent=1 // pred_fallthru
      _
    // Predicated region
    $region6: #{tpu_custom_call.1} parent=1 // pred_check
      _
    $region7: #{tpu_custom_call.1} parent=1 // pred_check_branch
      %27 = sbr.rel (0) target = $region9
    $region8: #{tpu_custom_call.1} parent=1 // pred_region
      %29 = vsyncadd [#allocation4], 0
      %s31 = sshll.u32 %s1, 4
      %s32 = int_to_ptr.hbm [resolvable:$true] %s31
      %34 = dma.hbm_to_smem %s32, 16, [#allocation6], [#allocation4]
    $region9: #{tpu_custom_call.1} parent=1 // pred_fallthru
      _
    // Predicated region
    $region10: #{tpu_custom_call.1} parent=1 // pred_check
      _
    $region11: #{tpu_custom_call.1} parent=1 // pred_check_branch
      %36 = sbr.rel (0) target = $region13
    $region12: #{tpu_custom_call.1} parent=1 // pred_region
      %38 = vsyncadd [#allocation5], 0
      %s40 = sshll.u32 %s2, 4
      %s41 = int_to_ptr.vmem [resolvable:$true] %s40
      %43 = dma.vmem_to_smem %s41, 16, [#allocation7], [#allocation5]
    $region13: #{tpu_custom_call.1} parent=1 // pred_fallthru
      _
    // Predicated region
    $region14: #{tpu_custom_call.1} parent=1 // pred_check
      _
    $region15: #{tpu_custom_call.1} parent=1 // pred_check_branch
      %45 = sbr.rel (0) target = $region17
    $region16: #{tpu_custom_call.1} parent=1 // pred_region
      %47 = vsyncadd [#allocation9], 0
      %s49 = sshll.u32 %s3, 4
      %s50 = int_to_ptr.vmem [resolvable:$true] %s49
      %52 = dma.vmem_to_smem %s50, 16, [#allocation8], [#allocation9]
    $region17: #{tpu_custom_call.1} parent=1 // pred_fallthru
      _
    // Predicated region
    $region18: #{tpu_custom_call.1} parent=1 // pred_check
      _
    $region19: #{tpu_custom_call.1} parent=1 // pred_check_branch
      %54 = sbr.rel (0) target = $region21
    $region20: #{tpu_custom_call.1} parent=1 // pred_region
      %56 = dma.done [#allocation3], 1536
    $region21: #{tpu_custom_call.1} parent=1 // pred_fallthru
      _
    // Predicated region
    $region22: #{tpu_custom_call.1} parent=1 // pred_check
      _
    $region23: #{tpu_custom_call.1} parent=1 // pred_check_branch
      %58 = sbr.rel (0) target = $region25
    $region24: #{tpu_custom_call.1} parent=1 // pred_region
      %60 = dma.done [#allocation4], 16
    $region25: #{tpu_custom_call.1} parent=1 // pred_fallthru
      _
    // Predicated region
    $region26: #{tpu_custom_call.1} parent=1 // pred_check
      _
    $region27: #{tpu_custom_call.1} parent=1 // pred_check_branch
      %62 = sbr.rel (0) target = $region29
    $region28: #{tpu_custom_call.1} parent=1 // pred_region
      %64 = dma.done [#allocation5], 16
    $region29: #{tpu_custom_call.1} parent=1 // pred_fallthru
      _
    // Predicated region
    $region30: #{tpu_custom_call.1} parent=1 // pred_check
      _
    $region31: #{tpu_custom_call.1} parent=1 // pred_check_branch
      %66 = sbr.rel (0) target = $region33
    $region32: #{tpu_custom_call.1} parent=1 // pred_region
      %68 = dma.done [#allocation9], 16
    $region33: #{tpu_custom_call.1} parent=1 // pred_fallthru
      _
    %69 = sfence
    %s70 = sld [smem:[#allocation7]]
    %v71 = vstv %s70
    %s72 = sld [smem:[#allocation7 + $0x1]]
    %v73 = vstv %s72
    %v74 = vld [vmem:[#allocation2] sm:$0xff]
    %v75 = vld [vmem:[#allocation2 + $0x8] sm:$0x3f]
    %s76 = sld [smem:[#allocation6]]
    %v77 = vstv %s76
    %v78 = vmul.f32 %v77, %v74
    %v79 = vmul.f32 %v77, %v75
    %v80 = vadd.f32 %v71, %v78
    %v81 = vadd.f32 %v71, %v79
    %s82 = sld [smem:[#allocation6 + $0x1b]]
    %v83 = vstv %s82
    %v84 = vmul.f32 %v83, %v74
    %v85 = vmul.f32 %v83, %v75
    %v86 = vadd.f32 %v73, %v84
    %v87 = vadd.f32 %v73, %v85
    %s88 = sld [smem:[#allocation6 + $0x1]]
    %v89 = vstv %s88
    %v90 = vmul.f32 %v89, %v74
    %v91 = vmul.f32 %v89, %v75
    %94 = vrot.lane.b32.xlu0 %v90, 127
    %v95 = vpop.permute.xlu0 %94
    %96 = vrot.lane.b32.xlu0 %v91, 127
    %v97 = vpop.permute.xlu0 %96
    %v100 = vadd.f32 %v80, %v95
    %v101 = vadd.f32 %v81, %v97
    %s102 = sld [smem:[#allocation6 + $0x1c]]
    %v103 = vstv %s102
    %v104 = vmul.f32 %v103, %v74
    %v105 = vmul.f32 %v103, %v75
    %108 = vrot.lane.b32.xlu0 %v104, 127
    %v109 = vpop.permute.xlu0 %108
    %110 = vrot.lane.b32.xlu0 %v105, 127
    %v111 = vpop.permute.xlu0 %110
    %v114 = vadd.f32 %v86, %v109
    %v115 = vadd.f32 %v87, %v111
    %s116 = sld [smem:[#allocation6 + $0x2]]
    %v117 = vstv %s116
    %v118 = vmul.f32 %v117, %v74
    %v119 = vmul.f32 %v117, %v75
    %122 = vrot.lane.b32.xlu0 %v118, 126
    %v123 = vpop.permute.xlu0 %122
    %124 = vrot.lane.b32.xlu0 %v119, 126
    %v125 = vpop.permute.xlu0 %124
    %v128 = vadd.f32 %v100, %v123
    %v129 = vadd.f32 %v101, %v125
    %s130 = sld [smem:[#allocation6 + $0x1d]]
    %v131 = vstv %s130
    %v132 = vmul.f32 %v131, %v74
    %v133 = vmul.f32 %v131, %v75
    %136 = vrot.lane.b32.xlu0 %v132, 126
    %v137 = vpop.permute.xlu0 %136
    %138 = vrot.lane.b32.xlu0 %v133, 126
    %v139 = vpop.permute.xlu0 %138
    %v142 = vadd.f32 %v114, %v137
    %v143 = vadd.f32 %v115, %v139
    %v144 = vld [vmem:[#allocation2 + $0x1] sm:$0xff]
    %v145 = vld [vmem:[#allocation2 + $0x9] sm:$0x3f]
    %s146 = sld [smem:[#allocation6 + $0x3]]
    %v147 = vstv %s146
    %v148 = vmul.f32 %v147, %v144
    %v149 = vmul.f32 %v147, %v145
    %v150 = vadd.f32 %v128, %v148
    %v151 = vadd.f32 %v129, %v149
    %s152 = sld [smem:[#allocation6 + $0x1e]]
    %v153 = vstv %s152
    %v154 = vmul.f32 %v153, %v144
    %v155 = vmul.f32 %v153, %v145
    %v156 = vadd.f32 %v142, %v154
    %v157 = vadd.f32 %v143, %v155
    %s158 = sld [smem:[#allocation6 + $0x4]]
    %v159 = vstv %s158
    %v160 = vmul.f32 %v159, %v144
    %v161 = vmul.f32 %v159, %v145
    %164 = vrot.lane.b32.xlu0 %v160, 127
    %v165 = vpop.permute.xlu0 %164
    %166 = vrot.lane.b32.xlu0 %v161, 127
    %v167 = vpop.permute.xlu0 %166
    %v170 = vadd.f32 %v150, %v165
    %v171 = vadd.f32 %v151, %v167
    %s172 = sld [smem:[#allocation6 + $0x1f]]
    %v173 = vstv %s172
    %v174 = vmul.f32 %v173, %v144
    %v175 = vmul.f32 %v173, %v145
    %178 = vrot.lane.b32.xlu0 %v174, 127
    %v179 = vpop.permute.xlu0 %178
    %180 = vrot.lane.b32.xlu0 %v175, 127
    %v181 = vpop.permute.xlu0 %180
    %v184 = vadd.f32 %v156, %v179
    %v185 = vadd.f32 %v157, %v181
    %s186 = sld [smem:[#allocation6 + $0x5]]
    %v187 = vstv %s186
    %v188 = vmul.f32 %v187, %v144
    %v189 = vmul.f32 %v187, %v145
    %192 = vrot.lane.b32.xlu0 %v188, 126
    %v193 = vpop.permute.xlu0 %192
    %194 = vrot.lane.b32.xlu0 %v189, 126
    %v195 = vpop.permute.xlu0 %194
    %v198 = vadd.f32 %v170, %v193
    %v199 = vadd.f32 %v171, %v195
    %s200 = sld [smem:[#allocation6 + $0x20]]
    %v201 = vstv %s200
    %v202 = vmul.f32 %v201, %v144
    %v203 = vmul.f32 %v201, %v145
    %206 = vrot.lane.b32.xlu0 %v202, 126
    %v207 = vpop.permute.xlu0 %206
    %208 = vrot.lane.b32.xlu0 %v203, 126
    %v209 = vpop.permute.xlu0 %208
    %v212 = vadd.f32 %v184, %v207
    %v213 = vadd.f32 %v185, %v209
    %v214 = vld [vmem:[#allocation2 + $0x2] sm:$0xff]
    %v215 = vld [vmem:[#allocation2 + $0xa] sm:$0x3f]
    %s216 = sld [smem:[#allocation6 + $0x6]]
    %v217 = vstv %s216
    %v218 = vmul.f32 %v217, %v214
    %v219 = vmul.f32 %v217, %v215
    %v220 = vadd.f32 %v198, %v218
    %v221 = vadd.f32 %v199, %v219
    %s222 = sld [smem:[#allocation6 + $0x21]]
    %v223 = vstv %s222
    %v224 = vmul.f32 %v223, %v214
    %v225 = vmul.f32 %v223, %v215
    %v226 = vadd.f32 %v212, %v224
    %v227 = vadd.f32 %v213, %v225
    %s228 = sld [smem:[#allocation6 + $0x7]]
    %v229 = vstv %s228
    %v230 = vmul.f32 %v229, %v214
    %v231 = vmul.f32 %v229, %v215
    %234 = vrot.lane.b32.xlu0 %v230, 127
    %v235 = vpop.permute.xlu0 %234
    %236 = vrot.lane.b32.xlu0 %v231, 127
    %v237 = vpop.permute.xlu0 %236
    %v240 = vadd.f32 %v220, %v235
    %v241 = vadd.f32 %v221, %v237
    %s242 = sld [smem:[#allocation6 + $0x22]]
    %v243 = vstv %s242
    %v244 = vmul.f32 %v243, %v214
    %v245 = vmul.f32 %v243, %v215
    %248 = vrot.lane.b32.xlu0 %v244, 127
    %v249 = vpop.permute.xlu0 %248
    %250 = vrot.lane.b32.xlu0 %v245, 127
    %v251 = vpop.permute.xlu0 %250
    %v254 = vadd.f32 %v226, %v249
    %v255 = vadd.f32 %v227, %v251
    %s256 = sld [smem:[#allocation6 + $0x8]]
    %v257 = vstv %s256
    %v258 = vmul.f32 %v257, %v214
    %v259 = vmul.f32 %v257, %v215
    %262 = vrot.lane.b32.xlu0 %v258, 126
    %v263 = vpop.permute.xlu0 %262
    %264 = vrot.lane.b32.xlu0 %v259, 126
    %v265 = vpop.permute.xlu0 %264
    %v268 = vadd.f32 %v240, %v263
    %v269 = vadd.f32 %v241, %v265
    %s270 = sld [smem:[#allocation6 + $0x23]]
    %v271 = vstv %s270
    %v272 = vmul.f32 %v271, %v214
    %v273 = vmul.f32 %v271, %v215
    %276 = vrot.lane.b32.xlu0 %v272, 126
    %v277 = vpop.permute.xlu0 %276
    %278 = vrot.lane.b32.xlu0 %v273, 126
    %v279 = vpop.permute.xlu0 %278
    %v282 = vadd.f32 %v254, %v277
    %v283 = vadd.f32 %v255, %v279
    %s284 = scalar_lea.vmem [#allocation2], 16
    %v285 = vld [vmem:[%s284] sm:$0xff]
    %v286 = vld [vmem:[%s284 + $0x8] sm:$0x3f]
    %s287 = sld [smem:[#allocation6 + $0x9]]
    %v288 = vstv %s287
    %v289 = vmul.f32 %v288, %v285
    %v290 = vmul.f32 %v288, %v286
    %v291 = vadd.f32 %v268, %v289
    %v292 = vadd.f32 %v269, %v290
    %s293 = sld [smem:[#allocation6 + $0x24]]
    %v294 = vstv %s293
    %v295 = vmul.f32 %v294, %v285
    %v296 = vmul.f32 %v294, %v286
    %v297 = vadd.f32 %v282, %v295
    %v298 = vadd.f32 %v283, %v296
    %s299 = sld [smem:[#allocation6 + $0xa]]
    %v300 = vstv %s299
    %v301 = vmul.f32 %v300, %v285
    %v302 = vmul.f32 %v300, %v286
    %305 = vrot.lane.b32.xlu0 %v301, 127
    %v306 = vpop.permute.xlu0 %305
    %307 = vrot.lane.b32.xlu0 %v302, 127
    %v308 = vpop.permute.xlu0 %307
    %v311 = vadd.f32 %v291, %v306
    %v312 = vadd.f32 %v292, %v308
    %s313 = sld [smem:[#allocation6 + $0x25]]
    %v314 = vstv %s313
    %v315 = vmul.f32 %v314, %v285
    %v316 = vmul.f32 %v314, %v286
    %319 = vrot.lane.b32.xlu0 %v315, 127
    %v320 = vpop.permute.xlu0 %319
    %321 = vrot.lane.b32.xlu0 %v316, 127
    %v322 = vpop.permute.xlu0 %321
    %v325 = vadd.f32 %v297, %v320
    %v326 = vadd.f32 %v298, %v322
    %s327 = sld [smem:[#allocation6 + $0xb]]
    %v328 = vstv %s327
    %v329 = vmul.f32 %v328, %v285
    %v330 = vmul.f32 %v328, %v286
    %333 = vrot.lane.b32.xlu0 %v329, 126
    %v334 = vpop.permute.xlu0 %333
    %335 = vrot.lane.b32.xlu0 %v330, 126
    %v336 = vpop.permute.xlu0 %335
    %v339 = vadd.f32 %v311, %v334
    %v340 = vadd.f32 %v312, %v336
    %s341 = sld [smem:[#allocation6 + $0x26]]
    %v342 = vstv %s341
    %v343 = vmul.f32 %v342, %v285
    %v344 = vmul.f32 %v342, %v286
    %347 = vrot.lane.b32.xlu0 %v343, 126
    %v348 = vpop.permute.xlu0 %347
    %349 = vrot.lane.b32.xlu0 %v344, 126
    %v350 = vpop.permute.xlu0 %349
    %v353 = vadd.f32 %v325, %v348
    %v354 = vadd.f32 %v326, %v350
    %v355 = vld [vmem:[%s284 + $0x1] sm:$0xff]
    %v356 = vld [vmem:[%s284 + $0x9] sm:$0x3f]
    %s357 = sld [smem:[#allocation6 + $0xc]]
    %v358 = vstv %s357
    %v359 = vmul.f32 %v358, %v355
    %v360 = vmul.f32 %v358, %v356
    %v361 = vadd.f32 %v339, %v359
    %v362 = vadd.f32 %v340, %v360
    %s363 = sld [smem:[#allocation6 + $0x27]]
    %v364 = vstv %s363
    %v365 = vmul.f32 %v364, %v355
    %v366 = vmul.f32 %v364, %v356
    %v367 = vadd.f32 %v353, %v365
    %v368 = vadd.f32 %v354, %v366
    %s369 = sld [smem:[#allocation6 + $0xd]]
    %v370 = vstv %s369
    %v371 = vmul.f32 %v370, %v355
    %v372 = vmul.f32 %v370, %v356
    %375 = vrot.lane.b32.xlu0 %v371, 127
    %v376 = vpop.permute.xlu0 %375
    %377 = vrot.lane.b32.xlu0 %v372, 127
    %v378 = vpop.permute.xlu0 %377
    %v381 = vadd.f32 %v361, %v376
    %v382 = vadd.f32 %v362, %v378
    %s383 = sld [smem:[#allocation6 + $0x28]]
    %v384 = vstv %s383
    %v385 = vmul.f32 %v384, %v355
    %v386 = vmul.f32 %v384, %v356
    %389 = vrot.lane.b32.xlu0 %v385, 127
    %v390 = vpop.permute.xlu0 %389
    %391 = vrot.lane.b32.xlu0 %v386, 127
    %v392 = vpop.permute.xlu0 %391
    %v395 = vadd.f32 %v367, %v390
    %v396 = vadd.f32 %v368, %v392
    %s397 = sld [smem:[#allocation6 + $0xe]]
    %v398 = vstv %s397
    %v399 = vmul.f32 %v398, %v355
    %v400 = vmul.f32 %v398, %v356
    %403 = vrot.lane.b32.xlu0 %v399, 126
    %v404 = vpop.permute.xlu0 %403
    %405 = vrot.lane.b32.xlu0 %v400, 126
    %v406 = vpop.permute.xlu0 %405
    %v409 = vadd.f32 %v381, %v404
    %v410 = vadd.f32 %v382, %v406
    %s411 = sld [smem:[#allocation6 + $0x29]]
    %v412 = vstv %s411
    %v413 = vmul.f32 %v412, %v355
    %v414 = vmul.f32 %v412, %v356
    %417 = vrot.lane.b32.xlu0 %v413, 126
    %v418 = vpop.permute.xlu0 %417
    %419 = vrot.lane.b32.xlu0 %v414, 126
    %v420 = vpop.permute.xlu0 %419
    %v423 = vadd.f32 %v395, %v418
    %v424 = vadd.f32 %v396, %v420
    %v425 = vld [vmem:[%s284 + $0x2] sm:$0xff]
    %v426 = vld [vmem:[%s284 + $0xa] sm:$0x3f]
    %s427 = sld [smem:[#allocation6 + $0xf]]
    %v428 = vstv %s427
    %v429 = vmul.f32 %v428, %v425
    %v430 = vmul.f32 %v428, %v426
    %v431 = vadd.f32 %v409, %v429
    %v432 = vadd.f32 %v410, %v430
    %s433 = sld [smem:[#allocation6 + $0x2a]]
    %v434 = vstv %s433
    %v435 = vmul.f32 %v434, %v425
    %v436 = vmul.f32 %v434, %v426
    %v437 = vadd.f32 %v423, %v435
    %v438 = vadd.f32 %v424, %v436
    %s439 = sld [smem:[#allocation6 + $0x10]]
    %v440 = vstv %s439
    %v441 = vmul.f32 %v440, %v425
    %v442 = vmul.f32 %v440, %v426
    %445 = vrot.lane.b32.xlu0 %v441, 127
    %v446 = vpop.permute.xlu0 %445
    %447 = vrot.lane.b32.xlu0 %v442, 127
    %v448 = vpop.permute.xlu0 %447
    %v451 = vadd.f32 %v431, %v446
    %v452 = vadd.f32 %v432, %v448
    %s453 = sld [smem:[#allocation6 + $0x2b]]
    %v454 = vstv %s453
    %v455 = vmul.f32 %v454, %v425
    %v456 = vmul.f32 %v454, %v426
    %459 = vrot.lane.b32.xlu0 %v455, 127
    %v460 = vpop.permute.xlu0 %459
    %461 = vrot.lane.b32.xlu0 %v456, 127
    %v462 = vpop.permute.xlu0 %461
    %v465 = vadd.f32 %v437, %v460
    %v466 = vadd.f32 %v438, %v462
    %s467 = sld [smem:[#allocation6 + $0x11]]
    %v468 = vstv %s467
    %v469 = vmul.f32 %v468, %v425
    %v470 = vmul.f32 %v468, %v426
    %473 = vrot.lane.b32.xlu0 %v469, 126
    %v474 = vpop.permute.xlu0 %473
    %475 = vrot.lane.b32.xlu0 %v470, 126
    %v476 = vpop.permute.xlu0 %475
    %v479 = vadd.f32 %v451, %v474
    %v480 = vadd.f32 %v452, %v476
    %s481 = sld [smem:[#allocation6 + $0x2c]]
    %v482 = vstv %s481
    %v483 = vmul.f32 %v482, %v425
    %v484 = vmul.f32 %v482, %v426
    %487 = vrot.lane.b32.xlu0 %v483, 126
    %v488 = vpop.permute.xlu0 %487
    %489 = vrot.lane.b32.xlu0 %v484, 126
    %v490 = vpop.permute.xlu0 %489
    %v493 = vadd.f32 %v465, %v488
    %v494 = vadd.f32 %v466, %v490
    %s495 = scalar_lea.vmem [#allocation2], 32
    %v496 = vld [vmem:[%s495] sm:$0xff]
    %v497 = vld [vmem:[%s495 + $0x8] sm:$0x3f]
    %s498 = sld [smem:[#allocation6 + $0x12]]
    %v499 = vstv %s498
    %v500 = vmul.f32 %v499, %v496
    %v501 = vmul.f32 %v499, %v497
    %v502 = vadd.f32 %v479, %v500
    %v503 = vadd.f32 %v480, %v501
    %s504 = sld [smem:[#allocation6 + $0x2d]]
    %v505 = vstv %s504
    %v506 = vmul.f32 %v505, %v496
    %v507 = vmul.f32 %v505, %v497
    %v508 = vadd.f32 %v493, %v506
    %v509 = vadd.f32 %v494, %v507
    %s510 = sld [smem:[#allocation6 + $0x13]]
    %v511 = vstv %s510
    %v512 = vmul.f32 %v511, %v496
    %v513 = vmul.f32 %v511, %v497
    %516 = vrot.lane.b32.xlu0 %v512, 127
    %v517 = vpop.permute.xlu0 %516
    %518 = vrot.lane.b32.xlu0 %v513, 127
    %v519 = vpop.permute.xlu0 %518
    %v522 = vadd.f32 %v502, %v517
    %v523 = vadd.f32 %v503, %v519
    %s524 = sld [smem:[#allocation6 + $0x2e]]
    %v525 = vstv %s524
    %v526 = vmul.f32 %v525, %v496
    %v527 = vmul.f32 %v525, %v497
    %530 = vrot.lane.b32.xlu0 %v526, 127
    %v531 = vpop.permute.xlu0 %530
    %532 = vrot.lane.b32.xlu0 %v527, 127
    %v533 = vpop.permute.xlu0 %532
    %v536 = vadd.f32 %v508, %v531
    %v537 = vadd.f32 %v509, %v533
    %s538 = sld [smem:[#allocation6 + $0x14]]
    %v539 = vstv %s538
    %v540 = vmul.f32 %v539, %v496
    %v541 = vmul.f32 %v539, %v497
    %544 = vrot.lane.b32.xlu0 %v540, 126
    %v545 = vpop.permute.xlu0 %544
    %546 = vrot.lane.b32.xlu0 %v541, 126
    %v547 = vpop.permute.xlu0 %546
    %v550 = vadd.f32 %v522, %v545
    %v551 = vadd.f32 %v523, %v547
    %s552 = sld [smem:[#allocation6 + $0x2f]]
    %v553 = vstv %s552
    %v554 = vmul.f32 %v553, %v496
    %v555 = vmul.f32 %v553, %v497
    %558 = vrot.lane.b32.xlu0 %v554, 126
    %v559 = vpop.permute.xlu0 %558
    %560 = vrot.lane.b32.xlu0 %v555, 126
    %v561 = vpop.permute.xlu0 %560
    %v564 = vadd.f32 %v536, %v559
    %v565 = vadd.f32 %v537, %v561
    %v566 = vld [vmem:[%s495 + $0x1] sm:$0xff]
    %v567 = vld [vmem:[%s495 + $0x9] sm:$0x3f]
    %s568 = sld [smem:[#allocation6 + $0x15]]
    %v569 = vstv %s568
    %v570 = vmul.f32 %v569, %v566
    %v571 = vmul.f32 %v569, %v567
    %v572 = vadd.f32 %v550, %v570
    %v573 = vadd.f32 %v551, %v571
    %s574 = sld [smem:[#allocation6 + $0x30]]
    %v575 = vstv %s574
    %v576 = vmul.f32 %v575, %v566
    %v577 = vmul.f32 %v575, %v567
    %v578 = vadd.f32 %v564, %v576
    %v579 = vadd.f32 %v565, %v577
    %s580 = sld [smem:[#allocation6 + $0x16]]
    %v581 = vstv %s580
    %v582 = vmul.f32 %v581, %v566
    %v583 = vmul.f32 %v581, %v567
    %586 = vrot.lane.b32.xlu0 %v582, 127
    %v587 = vpop.permute.xlu0 %586
    %588 = vrot.lane.b32.xlu0 %v583, 127
    %v589 = vpop.permute.xlu0 %588
    %v592 = vadd.f32 %v572, %v587
    %v593 = vadd.f32 %v573, %v589
    %s594 = sld [smem:[#allocation6 + $0x31]]
    %v595 = vstv %s594
    %v596 = vmul.f32 %v595, %v566
    %v597 = vmul.f32 %v595, %v567
    %600 = vrot.lane.b32.xlu0 %v596, 127
    %v601 = vpop.permute.xlu0 %600
    %602 = vrot.lane.b32.xlu0 %v597, 127
    %v603 = vpop.permute.xlu0 %602
    %v606 = vadd.f32 %v578, %v601
    %v607 = vadd.f32 %v579, %v603
    %s608 = sld [smem:[#allocation6 + $0x17]]
    %v609 = vstv %s608
    %v610 = vmul.f32 %v609, %v566
    %v611 = vmul.f32 %v609, %v567
    %614 = vrot.lane.b32.xlu0 %v610, 126
    %v615 = vpop.permute.xlu0 %614
    %616 = vrot.lane.b32.xlu0 %v611, 126
    %v617 = vpop.permute.xlu0 %616
    %v620 = vadd.f32 %v592, %v615
    %v621 = vadd.f32 %v593, %v617
    %s622 = sld [smem:[#allocation6 + $0x32]]
    %v623 = vstv %s622
    %v624 = vmul.f32 %v623, %v566
    %v625 = vmul.f32 %v623, %v567
    %628 = vrot.lane.b32.xlu0 %v624, 126
    %v629 = vpop.permute.xlu0 %628
    %630 = vrot.lane.b32.xlu0 %v625, 126
    %v631 = vpop.permute.xlu0 %630
    %v634 = vadd.f32 %v606, %v629
    %v635 = vadd.f32 %v607, %v631
    %v636 = vld [vmem:[%s495 + $0x2] sm:$0xff]
    %v637 = vld [vmem:[%s495 + $0xa] sm:$0x3f]
    %s638 = sld [smem:[#allocation6 + $0x18]]
    %v639 = vstv %s638
    %v640 = vmul.f32 %v639, %v636
    %v641 = vmul.f32 %v639, %v637
    %v642 = vadd.f32 %v620, %v640
    %v643 = vadd.f32 %v621, %v641
    %s644 = sld [smem:[#allocation6 + $0x33]]
    %v645 = vstv %s644
    %v646 = vmul.f32 %v645, %v636
    %v647 = vmul.f32 %v645, %v637
    %v648 = vadd.f32 %v634, %v646
    %v649 = vadd.f32 %v635, %v647
    %s650 = sld [smem:[#allocation6 + $0x19]]
    %v651 = vstv %s650
    %v652 = vmul.f32 %v651, %v636
    %v653 = vmul.f32 %v651, %v637
    %656 = vrot.lane.b32.xlu0 %v652, 127
    %v657 = vpop.permute.xlu0 %656
    %658 = vrot.lane.b32.xlu0 %v653, 127
    %v659 = vpop.permute.xlu0 %658
    %v662 = vadd.f32 %v642, %v657
    %v663 = vadd.f32 %v643, %v659
    %s664 = sld [smem:[#allocation6 + $0x34]]
    %v665 = vstv %s664
    %v666 = vmul.f32 %v665, %v636
    %v667 = vmul.f32 %v665, %v637
    %670 = vrot.lane.b32.xlu0 %v666, 127
    %v671 = vpop.permute.xlu0 %670
    %672 = vrot.lane.b32.xlu0 %v667, 127
    %v673 = vpop.permute.xlu0 %672
    %v676 = vadd.f32 %v648, %v671
    %v677 = vadd.f32 %v649, %v673
    %s678 = sld [smem:[#allocation6 + $0x1a]]
    %v679 = vstv %s678
    %v680 = vmul.f32 %v679, %v636
    %v681 = vmul.f32 %v679, %v637
    %684 = vrot.lane.b32.xlu0 %v680, 126
    %v685 = vpop.permute.xlu0 %684
    %686 = vrot.lane.b32.xlu0 %v681, 126
    %v687 = vpop.permute.xlu0 %686
    %v690 = vadd.f32 %v662, %v685
    %v691 = vadd.f32 %v663, %v687
    %s692 = sld [smem:[#allocation6 + $0x35]]
    %v693 = vstv %s692
    %v694 = vmul.f32 %v693, %v636
    %v695 = vmul.f32 %v693, %v637
    %698 = vrot.lane.b32.xlu0 %v694, 126
    %v699 = vpop.permute.xlu0 %698
    %700 = vrot.lane.b32.xlu0 %v695, 126
    %v701 = vpop.permute.xlu0 %700
    %v704 = vadd.f32 %v676, %v699
    %v705 = vadd.f32 %v677, %v701
    %vm706 = vcmp.ge.f32.partialorder %v690, 0.0
    %vm707 = vcmp.ge.f32.partialorder %v691, 0.0
    %v708 = vmul.f32 %v690, 0.33
    %v709 = vmul.f32 %v691, 0.33
    %v710 = vsel %vm706, %v690, %v708
    %v711 = vsel %vm707, %v691, %v709
    %vm712 = vcmp.ge.f32.partialorder %v704, 0.0
    %vm713 = vcmp.ge.f32.partialorder %v705, 0.0
    %v714 = vmul.f32 %v704, 0.33
    %v715 = vmul.f32 %v705, 0.33
    %v716 = vsel %vm712, %v704, %v714
    %v717 = vsel %vm713, %v705, %v715
    %s718 = sld [smem:[#allocation8]]
    %v719 = vstv %s718
    %v720 = vmul.f32 %v719, %v710
    %v721 = vmul.f32 %v719, %v711
    %s722 = sld [smem:[#allocation8 + $0x1]]
    %v723 = vstv %s722
    %v724 = vmul.f32 %v723, %v716
    %v725 = vmul.f32 %v723, %v717
    %v726 = vadd.f32 %v720, %v724
    %v727 = vadd.f32 %v721, %v725
    %vm728 = vcmask 113664
    %729 = vst.msk [vmem:[%s4] sm:$0xff] %vm728, %v726
    %vm730 = vcmask 111616
    %731 = vst.msk [vmem:[%s4 + $0x8] sm:$0x3f] %vm730, %v727
    %s732 = sld [smem:[#allocation8 + $0x2]]
    %v733 = vstv %s732
    %v734 = vmul.f32 %v733, %v710
    %v735 = vmul.f32 %v733, %v711
    %s736 = sld [smem:[#allocation8 + $0x3]]
    %v737 = vstv %s736
    %v738 = vmul.f32 %v737, %v716
    %v739 = vmul.f32 %v737, %v717
    %v740 = vadd.f32 %v734, %v738
    %v741 = vadd.f32 %v735, %v739
    %s742 = scalar_lea.vmem %s4, 16
    %743 = vst.msk [vmem:[%s742] sm:$0xff] %vm728, %v740
    %744 = vst.msk [vmem:[%s742 + $0x8] sm:$0x3f] %vm730, %v741
    %s745 = sld [smem:[#allocation7]]
    %v746 = vstv %s745
    %s747 = sld [smem:[#allocation7 + $0x1]]
    %v748 = vstv %s747
    %s749 = scalar_lea.vmem [#allocation2], 48
    %v750 = vld [vmem:[%s749] sm:$0xff]
    %v751 = vld [vmem:[%s749 + $0x8] sm:$0x3f]
    %s752 = sld [smem:[#allocation6]]
    %v753 = vstv %s752
    %v754 = vmul.f32 %v753, %v750
    %v755 = vmul.f32 %v753, %v751
    %v756 = vadd.f32 %v746, %v754
    %v757 = vadd.f32 %v746, %v755
    %s758 = sld [smem:[#allocation6 + $0x1b]]
    %v759 = vstv %s758
    %v760 = vmul.f32 %v759, %v750
    %v761 = vmul.f32 %v759, %v751
    %v762 = vadd.f32 %v748, %v760
    %v763 = vadd.f32 %v748, %v761
    %s764 = sld [smem:[#allocation6 + $0x1]]
    %v765 = vstv %s764
    %v766 = vmul.f32 %v765, %v750
    %v767 = vmul.f32 %v765, %v751
    %770 = vrot.lane.b32.xlu0 %v766, 127
    %v771 = vpop.permute.xlu0 %770
    %772 = vrot.lane.b32.xlu0 %v767, 127
    %v773 = vpop.permute.xlu0 %772
    %v776 = vadd.f32 %v756, %v771
    %v777 = vadd.f32 %v757, %v773
    %s778 = sld [smem:[#allocation6 + $0x1c]]
    %v779 = vstv %s778
    %v780 = vmul.f32 %v779, %v750
    %v781 = vmul.f32 %v779, %v751
    %784 = vrot.lane.b32.xlu0 %v780, 127
    %v785 = vpop.permute.xlu0 %784
    %786 = vrot.lane.b32.xlu0 %v781, 127
    %v787 = vpop.permute.xlu0 %786
    %v790 = vadd.f32 %v762, %v785
    %v791 = vadd.f32 %v763, %v787
    %s792 = sld [smem:[#allocation6 + $0x2]]
    %v793 = vstv %s792
    %v794 = vmul.f32 %v793, %v750
    %v795 = vmul.f32 %v793, %v751
    %798 = vrot.lane.b32.xlu0 %v794, 126
    %v799 = vpop.permute.xlu0 %798
    %800 = vrot.lane.b32.xlu0 %v795, 126
    %v801 = vpop.permute.xlu0 %800
    %v804 = vadd.f32 %v776, %v799
    %v805 = vadd.f32 %v777, %v801
    %s806 = sld [smem:[#allocation6 + $0x1d]]
    %v807 = vstv %s806
    %v808 = vmul.f32 %v807, %v750
    %v809 = vmul.f32 %v807, %v751
    %812 = vrot.lane.b32.xlu0 %v808, 126
    %v813 = vpop.permute.xlu0 %812
    %814 = vrot.lane.b32.xlu0 %v809, 126
    %v815 = vpop.permute.xlu0 %814
    %v818 = vadd.f32 %v790, %v813
    %v819 = vadd.f32 %v791, %v815
    %v820 = vld [vmem:[%s749 + $0x1] sm:$0xff]
    %v821 = vld [vmem:[%s749 + $0x9] sm:$0x3f]
    %s822 = sld [smem:[#allocation6 + $0x3]]
    %v823 = vstv %s822
    %v824 = vmul.f32 %v823, %v820
    %v825 = vmul.f32 %v823, %v821
    %v826 = vadd.f32 %v804, %v824
    %v827 = vadd.f32 %v805, %v825
    %s828 = sld [smem:[#allocation6 + $0x1e]]
    %v829 = vstv %s828
    %v830 = vmul.f32 %v829, %v820
    %v831 = vmul.f32 %v829, %v821
    %v832 = vadd.f32 %v818, %v830
    %v833 = vadd.f32 %v819, %v831
    %s834 = sld [smem:[#allocation6 + $0x4]]
    %v835 = vstv %s834
    %v836 = vmul.f32 %v835, %v820
    %v837 = vmul.f32 %v835, %v821
    %840 = vrot.lane.b32.xlu0 %v836, 127
    %v841 = vpop.permute.xlu0 %840
    %842 = vrot.lane.b32.xlu0 %v837, 127
    %v843 = vpop.permute.xlu0 %842
    %v846 = vadd.f32 %v826, %v841
    %v847 = vadd.f32 %v827, %v843
    %s848 = sld [smem:[#allocation6 + $0x1f]]
    %v849 = vstv %s848
    %v850 = vmul.f32 %v849, %v820
    %v851 = vmul.f32 %v849, %v821
    %854 = vrot.lane.b32.xlu0 %v850, 127
    %v855 = vpop.permute.xlu0 %854
    %856 = vrot.lane.b32.xlu0 %v851, 127
    %v857 = vpop.permute.xlu0 %856
    %v860 = vadd.f32 %v832, %v855
    %v861 = vadd.f32 %v833, %v857
    %s862 = sld [smem:[#allocation6 + $0x5]]
    %v863 = vstv %s862
    %v864 = vmul.f32 %v863, %v820
    %v865 = vmul.f32 %v863, %v821
    %868 = vrot.lane.b32.xlu0 %v864, 126
    %v869 = vpop.permute.xlu0 %868
    %870 = vrot.lane.b32.xlu0 %v865, 126
    %v871 = vpop.permute.xlu0 %870
    %v874 = vadd.f32 %v846, %v869
    %v875 = vadd.f32 %v847, %v871
    %s876 = sld [smem:[#allocation6 + $0x20]]
    %v877 = vstv %s876
    %v878 = vmul.f32 %v877, %v820
    %v879 = vmul.f32 %v877, %v821
    %882 = vrot.lane.b32.xlu0 %v878, 126
    %v883 = vpop.permute.xlu0 %882
    %884 = vrot.lane.b32.xlu0 %v879, 126
    %v885 = vpop.permute.xlu0 %884
    %v888 = vadd.f32 %v860, %v883
    %v889 = vadd.f32 %v861, %v885
    %v890 = vld [vmem:[%s749 + $0x2] sm:$0xff]
    %v891 = vld [vmem:[%s749 + $0xa] sm:$0x3f]
    %s892 = sld [smem:[#allocation6 + $0x6]]
    %v893 = vstv %s892
    %v894 = vmul.f32 %v893, %v890
    %v895 = vmul.f32 %v893, %v891
    %v896 = vadd.f32 %v874, %v894
    %v897 = vadd.f32 %v875, %v895
    %s898 = sld [smem:[#allocation6 + $0x21]]
    %v899 = vstv %s898
    %v900 = vmul.f32 %v899, %v890
    %v901 = vmul.f32 %v899, %v891
    %v902 = vadd.f32 %v888, %v900
    %v903 = vadd.f32 %v889, %v901
    %s904 = sld [smem:[#allocation6 + $0x7]]
    %v905 = vstv %s904
    %v906 = vmul.f32 %v905, %v890
    %v907 = vmul.f32 %v905, %v891
    %910 = vrot.lane.b32.xlu0 %v906, 127
    %v911 = vpop.permute.xlu0 %910
    %912 = vrot.lane.b32.xlu0 %v907, 127
    %v913 = vpop.permute.xlu0 %912
    %v916 = vadd.f32 %v896, %v911
    %v917 = vadd.f32 %v897, %v913
    %s918 = sld [smem:[#allocation6 + $0x22]]
    %v919 = vstv %s918
    %v920 = vmul.f32 %v919, %v890
    %v921 = vmul.f32 %v919, %v891
    %924 = vrot.lane.b32.xlu0 %v920, 127
    %v925 = vpop.permute.xlu0 %924
    %926 = vrot.lane.b32.xlu0 %v921, 127
    %v927 = vpop.permute.xlu0 %926
    %v930 = vadd.f32 %v902, %v925
    %v931 = vadd.f32 %v903, %v927
    %s932 = sld [smem:[#allocation6 + $0x8]]
    %v933 = vstv %s932
    %v934 = vmul.f32 %v933, %v890
    %v935 = vmul.f32 %v933, %v891
    %938 = vrot.lane.b32.xlu0 %v934, 126
    %v939 = vpop.permute.xlu0 %938
    %940 = vrot.lane.b32.xlu0 %v935, 126
    %v941 = vpop.permute.xlu0 %940
    %v944 = vadd.f32 %v916, %v939
    %v945 = vadd.f32 %v917, %v941
    %s946 = sld [smem:[#allocation6 + $0x23]]
    %v947 = vstv %s946
    %v948 = vmul.f32 %v947, %v890
    %v949 = vmul.f32 %v947, %v891
    %952 = vrot.lane.b32.xlu0 %v948, 126
    %v953 = vpop.permute.xlu0 %952
    %954 = vrot.lane.b32.xlu0 %v949, 126
    %v955 = vpop.permute.xlu0 %954
    %v958 = vadd.f32 %v930, %v953
    %v959 = vadd.f32 %v931, %v955
    %s960 = scalar_lea.vmem [#allocation2], 64
    %v961 = vld [vmem:[%s960] sm:$0xff]
    %v962 = vld [vmem:[%s960 + $0x8] sm:$0x3f]
    %s963 = sld [smem:[#allocation6 + $0x9]]
    %v964 = vstv %s963
    %v965 = vmul.f32 %v964, %v961
    %v966 = vmul.f32 %v964, %v962
    %v967 = vadd.f32 %v944, %v965
    %v968 = vadd.f32 %v945, %v966
    %s969 = sld [smem:[#allocation6 + $0x24]]
    %v970 = vstv %s969
    %v971 = vmul.f32 %v970, %v961
    %v972 = vmul.f32 %v970, %v962
    %v973 = vadd.f32 %v958, %v971
    %v974 = vadd.f32 %v959, %v972
    %s975 = sld [smem:[#allocation6 + $0xa]]
    %v976 = vstv %s975
    %v977 = vmul.f32 %v976, %v961
    %v978 = vmul.f32 %v976, %v962
    %981 = vrot.lane.b32.xlu0 %v977, 127
    %v982 = vpop.permute.xlu0 %981
    %983 = vrot.lane.b32.xlu0 %v978, 127
    %v984 = vpop.permute.xlu0 %983
    %v987 = vadd.f32 %v967, %v982
    %v988 = vadd.f32 %v968, %v984
    %s989 = sld [smem:[#allocation6 + $0x25]]
    %v990 = vstv %s989
    %v991 = vmul.f32 %v990, %v961
    %v992 = vmul.f32 %v990, %v962
    %995 = vrot.lane.b32.xlu0 %v991, 127
    %v996 = vpop.permute.xlu0 %995
    %997 = vrot.lane.b32.xlu0 %v992, 127
    %v998 = vpop.permute.xlu0 %997
    %v1001 = vadd.f32 %v973, %v996
    %v1002 = vadd.f32 %v974, %v998
    %s1003 = sld [smem:[#allocation6 + $0xb]]
    %v1004 = vstv %s1003
    %v1005 = vmul.f32 %v1004, %v961
    %v1006 = vmul.f32 %v1004, %v962
    %1009 = vrot.lane.b32.xlu0 %v1005, 126
    %v1010 = vpop.permute.xlu0 %1009
    %1011 = vrot.lane.b32.xlu0 %v1006, 126
    %v1012 = vpop.permute.xlu0 %1011
    %v1015 = vadd.f32 %v987, %v1010
    %v1016 = vadd.f32 %v988, %v1012
    %s1017 = sld [smem:[#allocation6 + $0x26]]
    %v1018 = vstv %s1017
    %v1019 = vmul.f32 %v1018, %v961
    %v1020 = vmul.f32 %v1018, %v962
    %1023 = vrot.lane.b32.xlu0 %v1019, 126
    %v1024 = vpop.permute.xlu0 %1023
    %1025 = vrot.lane.b32.xlu0 %v1020, 126
    %v1026 = vpop.permute.xlu0 %1025
    %v1029 = vadd.f32 %v1001, %v1024
    %v1030 = vadd.f32 %v1002, %v1026
    %v1031 = vld [vmem:[%s960 + $0x1] sm:$0xff]
    %v1032 = vld [vmem:[%s960 + $0x9] sm:$0x3f]
    %s1033 = sld [smem:[#allocation6 + $0xc]]
    %v1034 = vstv %s1033
    %v1035 = vmul.f32 %v1034, %v1031
    %v1036 = vmul.f32 %v1034, %v1032
    %v1037 = vadd.f32 %v1015, %v1035
    %v1038 = vadd.f32 %v1016, %v1036
    %s1039 = sld [smem:[#allocation6 + $0x27]]
    %v1040 = vstv %s1039
    %v1041 = vmul.f32 %v1040, %v1031
    %v1042 = vmul.f32 %v1040, %v1032
    %v1043 = vadd.f32 %v1029, %v1041
    %v1044 = vadd.f32 %v1030, %v1042
    %s1045 = sld [smem:[#allocation6 + $0xd]]
    %v1046 = vstv %s1045
    %v1047 = vmul.f32 %v1046, %v1031
    %v1048 = vmul.f32 %v1046, %v1032
    %1051 = vrot.lane.b32.xlu0 %v1047, 127
    %v1052 = vpop.permute.xlu0 %1051
    %1053 = vrot.lane.b32.xlu0 %v1048, 127
    %v1054 = vpop.permute.xlu0 %1053
    %v1057 = vadd.f32 %v1037, %v1052
    %v1058 = vadd.f32 %v1038, %v1054
    %s1059 = sld [smem:[#allocation6 + $0x28]]
    %v1060 = vstv %s1059
    %v1061 = vmul.f32 %v1060, %v1031
    %v1062 = vmul.f32 %v1060, %v1032
    %1065 = vrot.lane.b32.xlu0 %v1061, 127
    %v1066 = vpop.permute.xlu0 %1065
    %1067 = vrot.lane.b32.xlu0 %v1062, 127
    %v1068 = vpop.permute.xlu0 %1067
    %v1071 = vadd.f32 %v1043, %v1066
    %v1072 = vadd.f32 %v1044, %v1068
    %s1073 = sld [smem:[#allocation6 + $0xe]]
    %v1074 = vstv %s1073
    %v1075 = vmul.f32 %v1074, %v1031
    %v1076 = vmul.f32 %v1074, %v1032
    %1079 = vrot.lane.b32.xlu0 %v1075, 126
    %v1080 = vpop.permute.xlu0 %1079
    %1081 = vrot.lane.b32.xlu0 %v1076, 126
    %v1082 = vpop.permute.xlu0 %1081
    %v1085 = vadd.f32 %v1057, %v1080
    %v1086 = vadd.f32 %v1058, %v1082
    %s1087 = sld [smem:[#allocation6 + $0x29]]
    %v1088 = vstv %s1087
    %v1089 = vmul.f32 %v1088, %v1031
    %v1090 = vmul.f32 %v1088, %v1032
    %1093 = vrot.lane.b32.xlu0 %v1089, 126
    %v1094 = vpop.permute.xlu0 %1093
    %1095 = vrot.lane.b32.xlu0 %v1090, 126
    %v1096 = vpop.permute.xlu0 %1095
    %v1099 = vadd.f32 %v1071, %v1094
    %v1100 = vadd.f32 %v1072, %v1096
    %v1101 = vld [vmem:[%s960 + $0x2] sm:$0xff]
    %v1102 = vld [vmem:[%s960 + $0xa] sm:$0x3f]
    %s1103 = sld [smem:[#allocation6 + $0xf]]
    %v1104 = vstv %s1103
    %v1105 = vmul.f32 %v1104, %v1101
    %v1106 = vmul.f32 %v1104, %v1102
    %v1107 = vadd.f32 %v1085, %v1105
    %v1108 = vadd.f32 %v1086, %v1106
    %s1109 = sld [smem:[#allocation6 + $0x2a]]
    %v1110 = vstv %s1109
    %v1111 = vmul.f32 %v1110, %v1101
    %v1112 = vmul.f32 %v1110, %v1102
    %v1113 = vadd.f32 %v1099, %v1111
    %v1114 = vadd.f32 %v1100, %v1112
    %s1115 = sld [smem:[#allocation6 + $0x10]]
    %v1116 = vstv %s1115
    %v1117 = vmul.f32 %v1116, %v1101
    %v1118 = vmul.f32 %v1116, %v1102
    %1121 = vrot.lane.b32.xlu0 %v1117, 127
    %v1122 = vpop.permute.xlu0 %1121
    %1123 = vrot.lane.b32.xlu0 %v1118, 127
    %v1124 = vpop.permute.xlu0 %1123
    %v1127 = vadd.f32 %v1107, %v1122
    %v1128 = vadd.f32 %v1108, %v1124
    %s1129 = sld [smem:[#allocation6 + $0x2b]]
    %v1130 = vstv %s1129
    %v1131 = vmul.f32 %v1130, %v1101
    %v1132 = vmul.f32 %v1130, %v1102
    %1135 = vrot.lane.b32.xlu0 %v1131, 127
    %v1136 = vpop.permute.xlu0 %1135
    %1137 = vrot.lane.b32.xlu0 %v1132, 127
    %v1138 = vpop.permute.xlu0 %1137
    %v1141 = vadd.f32 %v1113, %v1136
    %v1142 = vadd.f32 %v1114, %v1138
    %s1143 = sld [smem:[#allocation6 + $0x11]]
    %v1144 = vstv %s1143
    %v1145 = vmul.f32 %v1144, %v1101
    %v1146 = vmul.f32 %v1144, %v1102
    %1149 = vrot.lane.b32.xlu0 %v1145, 126
    %v1150 = vpop.permute.xlu0 %1149
    %1151 = vrot.lane.b32.xlu0 %v1146, 126
    %v1152 = vpop.permute.xlu0 %1151
    %v1155 = vadd.f32 %v1127, %v1150
    %v1156 = vadd.f32 %v1128, %v1152
    %s1157 = sld [smem:[#allocation6 + $0x2c]]
    %v1158 = vstv %s1157
    %v1159 = vmul.f32 %v1158, %v1101
    %v1160 = vmul.f32 %v1158, %v1102
    %1163 = vrot.lane.b32.xlu0 %v1159, 126
    %v1164 = vpop.permute.xlu0 %1163
    %1165 = vrot.lane.b32.xlu0 %v1160, 126
    %v1166 = vpop.permute.xlu0 %1165
    %v1169 = vadd.f32 %v1141, %v1164
    %v1170 = vadd.f32 %v1142, %v1166
    %s1171 = scalar_lea.vmem [#allocation2], 80
    %v1172 = vld [vmem:[%s1171] sm:$0xff]
    %v1173 = vld [vmem:[%s1171 + $0x8] sm:$0x3f]
    %s1174 = sld [smem:[#allocation6 + $0x12]]
    %v1175 = vstv %s1174
    %v1176 = vmul.f32 %v1175, %v1172
    %v1177 = vmul.f32 %v1175, %v1173
    %v1178 = vadd.f32 %v1155, %v1176
    %v1179 = vadd.f32 %v1156, %v1177
    %s1180 = sld [smem:[#allocation6 + $0x2d]]
    %v1181 = vstv %s1180
    %v1182 = vmul.f32 %v1181, %v1172
    %v1183 = vmul.f32 %v1181, %v1173
    %v1184 = vadd.f32 %v1169, %v1182
    %v1185 = vadd.f32 %v1170, %v1183
    %s1186 = sld [smem:[#allocation6 + $0x13]]
    %v1187 = vstv %s1186
    %v1188 = vmul.f32 %v1187, %v1172
    %v1189 = vmul.f32 %v1187, %v1173
    %1192 = vrot.lane.b32.xlu0 %v1188, 127
    %v1193 = vpop.permute.xlu0 %1192
    %1194 = vrot.lane.b32.xlu0 %v1189, 127
    %v1195 = vpop.permute.xlu0 %1194
    %v1198 = vadd.f32 %v1178, %v1193
    %v1199 = vadd.f32 %v1179, %v1195
    %s1200 = sld [smem:[#allocation6 + $0x2e]]
    %v1201 = vstv %s1200
    %v1202 = vmul.f32 %v1201, %v1172
    %v1203 = vmul.f32 %v1201, %v1173
    %1206 = vrot.lane.b32.xlu0 %v1202, 127
    %v1207 = vpop.permute.xlu0 %1206
    %1208 = vrot.lane.b32.xlu0 %v1203, 127
    %v1209 = vpop.permute.xlu0 %1208
    %v1212 = vadd.f32 %v1184, %v1207
    %v1213 = vadd.f32 %v1185, %v1209
    %s1214 = sld [smem:[#allocation6 + $0x14]]
    %v1215 = vstv %s1214
    %v1216 = vmul.f32 %v1215, %v1172
    %v1217 = vmul.f32 %v1215, %v1173
    %1220 = vrot.lane.b32.xlu0 %v1216, 126
    %v1221 = vpop.permute.xlu0 %1220
    %1222 = vrot.lane.b32.xlu0 %v1217, 126
    %v1223 = vpop.permute.xlu0 %1222
    %v1226 = vadd.f32 %v1198, %v1221
    %v1227 = vadd.f32 %v1199, %v1223
    %s1228 = sld [smem:[#allocation6 + $0x2f]]
    %v1229 = vstv %s1228
    %v1230 = vmul.f32 %v1229, %v1172
    %v1231 = vmul.f32 %v1229, %v1173
    %1234 = vrot.lane.b32.xlu0 %v1230, 126
    %v1235 = vpop.permute.xlu0 %1234
    %1236 = vrot.lane.b32.xlu0 %v1231, 126
    %v1237 = vpop.permute.xlu0 %1236
    %v1240 = vadd.f32 %v1212, %v1235
    %v1241 = vadd.f32 %v1213, %v1237
    %v1242 = vld [vmem:[%s1171 + $0x1] sm:$0xff]
    %v1243 = vld [vmem:[%s1171 + $0x9] sm:$0x3f]
    %s1244 = sld [smem:[#allocation6 + $0x15]]
    %v1245 = vstv %s1244
    %v1246 = vmul.f32 %v1245, %v1242
    %v1247 = vmul.f32 %v1245, %v1243
    %v1248 = vadd.f32 %v1226, %v1246
    %v1249 = vadd.f32 %v1227, %v1247
    %s1250 = sld [smem:[#allocation6 + $0x30]]
    %v1251 = vstv %s1250
    %v1252 = vmul.f32 %v1251, %v1242
    %v1253 = vmul.f32 %v1251, %v1243
    %v1254 = vadd.f32 %v1240, %v1252
    %v1255 = vadd.f32 %v1241, %v1253
    %s1256 = sld [smem:[#allocation6 + $0x16]]
    %v1257 = vstv %s1256
    %v1258 = vmul.f32 %v1257, %v1242
    %v1259 = vmul.f32 %v1257, %v1243
    %1262 = vrot.lane.b32.xlu0 %v1258, 127
    %v1263 = vpop.permute.xlu0 %1262
    %1264 = vrot.lane.b32.xlu0 %v1259, 127
    %v1265 = vpop.permute.xlu0 %1264
    %v1268 = vadd.f32 %v1248, %v1263
    %v1269 = vadd.f32 %v1249, %v1265
    %s1270 = sld [smem:[#allocation6 + $0x31]]
    %v1271 = vstv %s1270
    %v1272 = vmul.f32 %v1271, %v1242
    %v1273 = vmul.f32 %v1271, %v1243
    %1276 = vrot.lane.b32.xlu0 %v1272, 127
    %v1277 = vpop.permute.xlu0 %1276
    %1278 = vrot.lane.b32.xlu0 %v1273, 127
    %v1279 = vpop.permute.xlu0 %1278
    %v1282 = vadd.f32 %v1254, %v1277
    %v1283 = vadd.f32 %v1255, %v1279
    %s1284 = sld [smem:[#allocation6 + $0x17]]
    %v1285 = vstv %s1284
    %v1286 = vmul.f32 %v1285, %v1242
    %v1287 = vmul.f32 %v1285, %v1243
    %1290 = vrot.lane.b32.xlu0 %v1286, 126
    %v1291 = vpop.permute.xlu0 %1290
    %1292 = vrot.lane.b32.xlu0 %v1287, 126
    %v1293 = vpop.permute.xlu0 %1292
    %v1296 = vadd.f32 %v1268, %v1291
    %v1297 = vadd.f32 %v1269, %v1293
    %s1298 = sld [smem:[#allocation6 + $0x32]]
    %v1299 = vstv %s1298
    %v1300 = vmul.f32 %v1299, %v1242
    %v1301 = vmul.f32 %v1299, %v1243
    %1304 = vrot.lane.b32.xlu0 %v1300, 126
    %v1305 = vpop.permute.xlu0 %1304
    %1306 = vrot.lane.b32.xlu0 %v1301, 126
    %v1307 = vpop.permute.xlu0 %1306
    %v1310 = vadd.f32 %v1282, %v1305
    %v1311 = vadd.f32 %v1283, %v1307
    %v1312 = vld [vmem:[%s1171 + $0x2] sm:$0xff]
    %v1313 = vld [vmem:[%s1171 + $0xa] sm:$0x3f]
    %s1314 = sld [smem:[#allocation6 + $0x18]]
    %v1315 = vstv %s1314
    %v1316 = vmul.f32 %v1315, %v1312
    %v1317 = vmul.f32 %v1315, %v1313
    %v1318 = vadd.f32 %v1296, %v1316
    %v1319 = vadd.f32 %v1297, %v1317
    %s1320 = sld [smem:[#allocation6 + $0x33]]
    %v1321 = vstv %s1320
    %v1322 = vmul.f32 %v1321, %v1312
    %v1323 = vmul.f32 %v1321, %v1313
    %v1324 = vadd.f32 %v1310, %v1322
    %v1325 = vadd.f32 %v1311, %v1323
    %s1326 = sld [smem:[#allocation6 + $0x19]]
    %v1327 = vstv %s1326
    %v1328 = vmul.f32 %v1327, %v1312
    %v1329 = vmul.f32 %v1327, %v1313
    %1332 = vrot.lane.b32.xlu0 %v1328, 127
    %v1333 = vpop.permute.xlu0 %1332
    %1334 = vrot.lane.b32.xlu0 %v1329, 127
    %v1335 = vpop.permute.xlu0 %1334
    %v1338 = vadd.f32 %v1318, %v1333
    %v1339 = vadd.f32 %v1319, %v1335
    %s1340 = sld [smem:[#allocation6 + $0x34]]
    %v1341 = vstv %s1340
    %v1342 = vmul.f32 %v1341, %v1312
    %v1343 = vmul.f32 %v1341, %v1313
    %1346 = vrot.lane.b32.xlu0 %v1342, 127
    %v1347 = vpop.permute.xlu0 %1346
    %1348 = vrot.lane.b32.xlu0 %v1343, 127
    %v1349 = vpop.permute.xlu0 %1348
    %v1352 = vadd.f32 %v1324, %v1347
    %v1353 = vadd.f32 %v1325, %v1349
    %s1354 = sld [smem:[#allocation6 + $0x1a]]
    %v1355 = vstv %s1354
    %v1356 = vmul.f32 %v1355, %v1312
    %v1357 = vmul.f32 %v1355, %v1313
    %1360 = vrot.lane.b32.xlu0 %v1356, 126
    %v1361 = vpop.permute.xlu0 %1360
    %1362 = vrot.lane.b32.xlu0 %v1357, 126
    %v1363 = vpop.permute.xlu0 %1362
    %v1366 = vadd.f32 %v1338, %v1361
    %v1367 = vadd.f32 %v1339, %v1363
    %s1368 = sld [smem:[#allocation6 + $0x35]]
    %v1369 = vstv %s1368
    %v1370 = vmul.f32 %v1369, %v1312
    %v1371 = vmul.f32 %v1369, %v1313
    %1374 = vrot.lane.b32.xlu0 %v1370, 126
    %v1375 = vpop.permute.xlu0 %1374
    %1376 = vrot.lane.b32.xlu0 %v1371, 126
    %v1377 = vpop.permute.xlu0 %1376
    %v1380 = vadd.f32 %v1352, %v1375
    %v1381 = vadd.f32 %v1353, %v1377
    %vm1382 = vcmp.ge.f32.partialorder %v1366, 0.0
    %vm1383 = vcmp.ge.f32.partialorder %v1367, 0.0
    %v1384 = vmul.f32 %v1366, 0.33
    %v1385 = vmul.f32 %v1367, 0.33
    %v1386 = vsel %vm1382, %v1366, %v1384
    %v1387 = vsel %vm1383, %v1367, %v1385
    %vm1388 = vcmp.ge.f32.partialorder %v1380, 0.0
    %vm1389 = vcmp.ge.f32.partialorder %v1381, 0.0
    %v1390 = vmul.f32 %v1380, 0.33
    %v1391 = vmul.f32 %v1381, 0.33
    %v1392 = vsel %vm1388, %v1380, %v1390
    %v1393 = vsel %vm1389, %v1381, %v1391
    %s1394 = sld [smem:[#allocation8]]
    %v1395 = vstv %s1394
    %v1396 = vmul.f32 %v1395, %v1386
    %v1397 = vmul.f32 %v1395, %v1387
    %s1398 = sld [smem:[#allocation8 + $0x1]]
    %v1399 = vstv %s1398
    %v1400 = vmul.f32 %v1399, %v1392
    %v1401 = vmul.f32 %v1399, %v1393
    %v1402 = vadd.f32 %v1396, %v1400
    %v1403 = vadd.f32 %v1397, %v1401
    %s1404 = scalar_lea.vmem %s4, 32
    %1405 = vst.msk [vmem:[%s1404] sm:$0xff] %vm728, %v1402
    %1406 = vst.msk [vmem:[%s1404 + $0x8] sm:$0x3f] %vm730, %v1403
    %s1407 = sld [smem:[#allocation8 + $0x2]]
    %v1408 = vstv %s1407
    %v1409 = vmul.f32 %v1408, %v1386
    %v1410 = vmul.f32 %v1408, %v1387
    %s1411 = sld [smem:[#allocation8 + $0x3]]
    %v1412 = vstv %s1411
    %v1413 = vmul.f32 %v1412, %v1392
    %v1414 = vmul.f32 %v1412, %v1393
    %v1415 = vadd.f32 %v1409, %v1413
    %v1416 = vadd.f32 %v1410, %v1414
    %s1417 = scalar_lea.vmem %s4, 48
    %1418 = vst.msk [vmem:[%s1417] sm:$0xff] %vm728, %v1415
    %1419 = vst.msk [vmem:[%s1417 + $0x8] sm:$0x3f] %vm730, %v1416
    // Predicated region
    $region34: #{tpu_custom_call.1} parent=1 // pred_check
      _
    $region35: #{tpu_custom_call.1} parent=1 // pred_check_branch
      %1421 = sbr.rel (0) target = $region37
    $region36: #{tpu_custom_call.1} parent=1 // pred_region
      _
    $region37: #{tpu_custom_call.1} parent=1 // pred_fallthru
      _
    // Predicated region
    $region38: #{tpu_custom_call.1} parent=1 // pred_check
      _
    $region39: #{tpu_custom_call.1} parent=1 // pred_check_branch
      %1423 = sbr.rel (0) target = $region41
    $region40: #{tpu_custom_call.1} parent=1 // pred_region
      _
    $region41: #{tpu_custom_call.1} parent=1 // pred_fallthru
      _
    %1424 = vsyncpa [#allocation3], 1
    %1425 = vsyncpa [#allocation4], 1
    %1426 = vsyncpa [#allocation5], 1
    %1427 = vsyncpa [#allocation9], 1

</llo_original>
